<compile_context>
chip_gen: v6e
topology: v6e:2x2x1
jax: 0.10.0
libtpu: 0.0.40
codegen_flags: <defaults>
</compile_context>

<pallas_src>
import math
import functools

import jax
import jax.numpy as jnp
from jax import lax
from jax.experimental import pallas as pl
from jax.experimental.pallas import tpu as pltpu

NBINS = 10
WIN_MEAN = 2 + 2      # 4
WIN_MAX = 3 + 3       # 6
THRESHOLD = 0.1
DEG_PER_RAD = 180.0 / math.pi

# odd minimax polynomial for atan(t), t in [0, 1]   (max err ~2e-6 rad)
_ATAN_C = (0.99997726, -0.33262347, 0.19354346, -0.11643287, 0.05265332, -0.01172120)


def _round_up(x, m):
    return (x + m - 1) // m * m


def _shift1(a):
    """a[..., t] -> a[..., t + 1] (circular lane rotation on the XLU).

    The wrapped last lane is NOT re-zeroed; every consumer masks lanes >= its own
    validity bound, which always excludes the wrapped lane (see call sites).
    """
    return pltpu.roll(a, shift=a.shape[-1] - 1, axis=a.ndim - 1)


def _angle_deg_mod180(mx, my):
    """Replacement for (atan2(my, mx) * 180/pi) mod 180, without atan2/fmod.

    The bin only depends on the direction mod 180 deg, so atan2's quadrant fix-up
    and the float fmod are redundant: fold into the first octant, evaluate a short
    atan polynomial, unfold.  Degenerate (0, 0) inputs yield NaN, which is harmless
    because their magnitude is 0 (they contribute nothing to any bin).
    """
    ax = jnp.abs(mx)
    ay = jnp.abs(my)
    den = jnp.maximum(ax, ay)
    num = jnp.minimum(ax, ay)
    r = pl.reciprocal(den, approx=True)          # EUP (free slot)
    r = r * (2.0 - den * r)                      # one Newton step -> ~full f32 accuracy
    t = num * r                                  # in [0, 1]
    t2 = t * t
    p = _ATAN_C[5]
    for c in (_ATAN_C[4], _ATAN_C[3], _ATAN_C[2], _ATAN_C[1], _ATAN_C[0]):
        p = p * t2 + c
    p_deg = (t * p) * DEG_PER_RAD                         # atan(min/max) in [0, 45] deg
    p_deg = jnp.where(ay > ax, 90.0 - p_deg, p_deg)       # angle of (|mx|, |my|), [0, 90]
    return jnp.where(mx * my >= 0.0, p_deg, 180.0 - p_deg)


def _rhythm_kernel(x_ref, peak_ref, env_ref, *, n, bt, J):
    # x_ref   : (2, bt*J, Tp) f32  -- coord {x,y}; (batch*joint) on sublanes, time on lanes
    # peak_ref: (bt, Tp) i32
    # env_ref : (bt, Tp) f32
    # n = T - 2 : number of valid rhy_env / rhy_peak entries (static)
    Tp = x_ref.shape[-1]
    rows = bt * J

    gx = x_ref[0]                                # (bt*J, Tp)
    gy = x_ref[1]

    # motion[t] = pose[t+1] - pose[t]; lanes >= T-1 are garbage but only feed env
    # lanes >= n, which are masked below.
    mx = _shift1(gx) - gx
    my = _shift1(gy) - gy

    mag = jnp.sqrt(mx * mx + my * my)
    deg = _angle_deg_mod180(mx, my)              # in [0, 180]
    fd = jnp.floor(deg)                          # exact small integer in float
    # floor-mod-10 kept in float (no int cast / integer modulo)
    binf = fd - 10.0 * jnp.floor((fd + 0.5) * 0.1)

    # block-diagonal segment-sum matrix (bt, bt*J): per-batch-row joint sum on the MXU
    row = lax.broadcasted_iota(jnp.int32, (bt, rows), 0)
    col = lax.broadcasted_iota(jnp.int32, (bt, rows), 1)
    R = jnp.logical_and(col >= row * J, col < (row + 1) * J).astype(jnp.float32)

    # directogram + spectral flux fused per bin; only the (bt, Tp) env accumulator
    # stays live across the 10 unrolled iterations.
    env = jnp.zeros((bt, Tp), jnp.float32)
    for k in range(NBINS):
        masked = jnp.where(binf == float(k), mag, 0.0)                     # (bt*J, Tp)
        d_k = jnp.dot(R, masked, preferred_element_type=jnp.float32)       # (bt, Tp)
        env = env + jnp.maximum(_shift1(d_k) - d_k, 0.0)

    t_idx = lax.broadcasted_iota(jnp.int32, (1, Tp), 1)
    valid = t_idx < n
    env_max = jnp.max(jnp.where(valid, env, -jnp.inf), axis=-1, keepdims=True)   # (bt, 1)
    # Deviation from torch: all-zero rows (static pose / batch padding) would divide
    # by 0 and produce NaN in torch; emit zeros instead so padded rows stay clean.
    env_max = jnp.where(env_max > 0.0, env_max, 1.0)
    env = jnp.where(valid, env * (1.0 / env_max), 0.0)          # only bt exact divisions
    env_ref[...] = env

    # ---- pick_peak (torch's "rhy_global_max" is actually a mean over time) ----
    gmean = jnp.sum(env, axis=-1, keepdims=True) * (1.0 / n)               # (bt, 1)

    s1 = _shift1(env)
    s2 = _shift1(s1)
    s3 = _shift1(s2)
    s4 = _shift1(s3)
    s5 = _shift1(s4)

    local_mean = (env + s1 + s2 + s3) * (1.0 / WIN_MEAN)
    local_mean = jnp.where(t_idx < n - (WIN_MEAN - 1), local_mean, 0.0)    # F.pad right
    local_max = jnp.maximum(jnp.maximum(jnp.maximum(env, s1), jnp.maximum(s2, s3)),
                            jnp.maximum(s4, s5))
    local_max = jnp.where(t_idx < n - (WIN_MAX - 1), local_max, 0.0)       # F.pad right

    peak = jnp.logical_and(local_max - local_mean > THRESHOLD * gmean,
                           local_max == env)
    peak_f = peak.astype(jnp.float32)
    keep = jnp.logical_and(_shift1(peak_f) != peak_f, t_idx < n - 1)
    # TODO(synk): torch returns int64 peaks; int64 needs jax x64 -- emitting int32.
    peak_ref[...] = jnp.where(keep, peak_f, 0.0).astype(jnp.int32)


def rhythm_encoder_forward(pose, *, block_bs=8):
    """pose: (bs, T, J, 3) float (same layout as the PyTorch module).
    Returns (rhy_peak (bs, T-2) int32, rhy_env (bs, T-2, 1) float32)."""
    bs, T, J, C = pose.shape
    assert C == 3
    assert T >= WIN_MAX + 2, "need T - 2 >= win_max (torch unfold requirement)"
    n = T - 2

    Tp = _round_up(T, 128)               # lane-dense layout: time on lanes
    bt = block_bs                        # batch rows per grid step; multiple of 8 so
    assert bt % 8 == 0                   # bt*J sublanes tile the (8, 128) grid exactly
    bs_pad = _round_up(bs, bt)

    # (bs, T, J, 2) -> (2, bs_pad*J, Tp): batch folded onto sublanes (no 17->24 padding).
    # Slice + transpose + pad + reshape stay one fused XLA op outside the kernel.
    xy = jnp.transpose(pose[..., :2], (3, 0, 2, 1)).astype(jnp.float32)     # (2, bs, J, T)
    xy = jnp.pad(xy, ((0, 0), (0, bs_pad - bs), (0, 0), (0, Tp - T)))
    xy = xy.reshape(2, bs_pad * J, Tp)

    # Real per-step working set: double-buffered input block + double-buffered outputs
    # + elementwise temporaries (motion / mag / bin / masked live around the bin loop).
    in_block = 2 * bt * J * Tp * 4
    out_block = 2 * bt * Tp * 4
    temps = 8 * bt * J * Tp * 4
    vmem_need = 2 * (in_block + out_block) + temps
    # TODO(synk): very long sequences need a time-tiled variant (1-frame halo); guard
    # instead of silently blowing past the scoped-VMEM ceiling (64 MiB physical on v7x).
    assert vmem_need <= (44 << 20), "T too long for the single-time-block kernel"
    vmem_limit = int(min(max(vmem_need + (4 << 20), 32 << 20), 48 << 20))

    kernel = functools.partial(_rhythm_kernel, n=n, bt=bt, J=J)
    peak_pad, env_pad = pl.pallas_call(
        kernel,
        out_shape=(jax.ShapeDtypeStruct((bs_pad, Tp), jnp.int32),
                   jax.ShapeDtypeStruct((bs_pad, Tp), jnp.float32)),
        grid_spec=pltpu.PrefetchScalarGridSpec(
            num_scalar_prefetch=0,
            grid=(bs_pad // bt,),
            in_specs=[pl.BlockSpec((2, bt * J, Tp), lambda b: (0, b, 0))],
            out_specs=(pl.BlockSpec((bt, Tp), lambda b: (b, 0)),
                       pl.BlockSpec((bt, Tp), lambda b: (b, 0))),
        ),
        # grid steps are independent batch blocks -> megacore-shardable on v7x
        # (>= 2 steps whenever bs > block_bs).
        compiler_params=pltpu.CompilerParams(
            dimension_semantics=("parallel",),
            vmem_limit_bytes=vmem_limit),
    )(xy)

    rhy_peak = peak_pad[:bs, :n]                 # (bs, n) int32
    rhy_env = env_pad[:bs, :n][..., None]        # (bs, n, 1) float32
    return rhy_peak, rhy_env


if __name__ == "__main__":
    key = jax.random.PRNGKey(0)
    pose = jax.random.normal(key, (2, 16, 17, 3), dtype=jnp.float32)
    rhy_peak, rhy_env = rhythm_encoder_forward(pose)
    jax.block_until_ready((rhy_peak, rhy_env))
    assert rhy_peak.shape == (2, 14) and rhy_env.shape == (2, 14, 1)
    assert rhy_peak.dtype == jnp.int32 and rhy_env.dtype == jnp.float32
    print("KERNEL_OK")
</pallas_src>

<mosaic_0001>
module attributes {stable_mosaic.version = 11 : i64} {
  func.func @_rhythm_kernel(%arg0: i32, %arg1: memref<2x136x128xf32, #tpu.memory_space<vmem>>, %arg2: memref<8x128xi32, #tpu.memory_space<vmem>>, %arg3: memref<8x128xf32, #tpu.memory_space<vmem>>) attributes {dimension_semantics = [#tpu.dimension_semantics<parallel>], iteration_bounds = array<i64: 1>, scalar_prefetch = 0 : i64, scratch_operands = 0 : i64, tpu.core_type = #tpu.core_type<tc>, window_params = [{transform_indices = @transform_0, window_bounds = array<i64: 2, 136, 128>}, {transform_indices = @transform_1, window_bounds = array<i64: 8, 128>}, {transform_indices = @transform_2, window_bounds = array<i64: 8, 128>}]} {
    %c0 = arith.constant 0 : index
    %c0_0 = arith.constant 0 : index
    %c0_1 = arith.constant 0 : index
    %0 = vector.load %arg1[%c0, %c0_0, %c0_1] : memref<2x136x128xf32, #tpu.memory_space<vmem>>, vector<1x136x128xf32>
    %1 = vector.shape_cast %0 : vector<1x136x128xf32> to vector<136x128xf32>
    %c1 = arith.constant 1 : index
    %c0_2 = arith.constant 0 : index
    %c0_3 = arith.constant 0 : index
    %2 = vector.load %arg1[%c1, %c0_2, %c0_3] : memref<2x136x128xf32, #tpu.memory_space<vmem>>, vector<1x136x128xf32>
    %3 = vector.shape_cast %2 : vector<1x136x128xf32> to vector<136x128xf32>
    %c127_i32 = arith.constant 127 : i32
    %4 = tpu.dynamic_rotate %1 by %c127_i32 dim 1 : vector<136x128xf32>, i32 -> vector<136x128xf32>
    %5 = arith.subf %4, %1 : vector<136x128xf32>
    %c127_i32_4 = arith.constant 127 : i32
    %6 = tpu.dynamic_rotate %3 by %c127_i32_4 dim 1 : vector<136x128xf32>, i32 -> vector<136x128xf32>
    %7 = arith.subf %6, %3 : vector<136x128xf32>
    %8 = arith.mulf %5, %5 : vector<136x128xf32>
    %9 = arith.mulf %7, %7 : vector<136x128xf32>
    %10 = arith.addf %8, %9 : vector<136x128xf32>
    %11 = math.sqrt %10 : vector<136x128xf32>
    %12 = math.absf %5 : vector<136x128xf32>
    %13 = math.absf %7 : vector<136x128xf32>
    %14 = arith.maximumf %12, %13 : vector<136x128xf32>
    %15 = arith.minimumf %12, %13 : vector<136x128xf32>
    %16 = tpu.reciprocal %14 {approx = true} : vector<136x128xf32> -> vector<136x128xf32>
    %17 = arith.mulf %14, %16 : vector<136x128xf32>
    %cst = arith.constant 2.000000e+00 : f32
    %18 = vector.broadcast %cst : f32 to vector<136x128xf32>
    %19 = arith.subf %18, %17 : vector<136x128xf32>
    %20 = arith.mulf %16, %19 : vector<136x128xf32>
    %21 = arith.mulf %15, %20 : vector<136x128xf32>
    %22 = arith.mulf %21, %21 : vector<136x128xf32>
    %cst_5 = arith.constant -1.172120e-02 : f32
    %23 = vector.broadcast %cst_5 : f32 to vector<136x128xf32>
    %24 = arith.mulf %23, %22 : vector<136x128xf32>
    %cst_6 = arith.constant 0.0526533201 : f32
    %25 = vector.broadcast %cst_6 : f32 to vector<136x128xf32>
    %26 = arith.addf %24, %25 : vector<136x128xf32>
    %27 = arith.mulf %26, %22 : vector<136x128xf32>
    %cst_7 = arith.constant -0.116432868 : f32
    %28 = vector.broadcast %cst_7 : f32 to vector<136x128xf32>
    %29 = arith.addf %27, %28 : vector<136x128xf32>
    %30 = arith.mulf %29, %22 : vector<136x128xf32>
    %cst_8 = arith.constant 0.193543464 : f32
    %31 = vector.broadcast %cst_8 : f32 to vector<136x128xf32>
    %32 = arith.addf %30, %31 : vector<136x128xf32>
    %33 = arith.mulf %32, %22 : vector<136x128xf32>
    %cst_9 = arith.constant -0.332623482 : f32
    %34 = vector.broadcast %cst_9 : f32 to vector<136x128xf32>
    %35 = arith.addf %33, %34 : vector<136x128xf32>
    %36 = arith.mulf %35, %22 : vector<136x128xf32>
    %cst_10 = arith.constant 0.999977231 : f32
    %37 = vector.broadcast %cst_10 : f32 to vector<136x128xf32>
    %38 = arith.addf %36, %37 : vector<136x128xf32>
    %39 = arith.mulf %21, %38 : vector<136x128xf32>
    %cst_11 = arith.constant 57.2957802 : f32
    %40 = vector.broadcast %cst_11 : f32 to vector<136x128xf32>
    %41 = arith.mulf %39, %40 : vector<136x128xf32>
    %42 = arith.cmpf ogt, %13, %12 : vector<136x128xf32>
    %cst_12 = arith.constant 9.000000e+01 : f32
    %43 = vector.broadcast %cst_12 : f32 to vector<136x128xf32>
    %44 = arith.subf %43, %41 : vector<136x128xf32>
    %45 = arith.select %42, %44, %41 : vector<136x128xi1>, vector<136x128xf32>
    %46 = arith.mulf %5, %7 : vector<136x128xf32>
    %cst_13 = arith.constant 0.000000e+00 : f32
    %47 = vector.broadcast %cst_13 : f32 to vector<136x128xf32>
    %48 = arith.cmpf oge, %46, %47 : vector<136x128xf32>
    %cst_14 = arith.constant 1.800000e+02 : f32
    %49 = vector.broadcast %cst_14 : f32 to vector<136x128xf32>
    %50 = arith.subf %49, %45 : vector<136x128xf32>
    %51 = arith.select %48, %45, %50 : vector<136x128xi1>, vector<136x128xf32>
    %52 = math.floor %51 : vector<136x128xf32>
    %cst_15 = arith.constant 5.000000e-01 : f32
    %53 = vector.broadcast %cst_15 : f32 to vector<136x128xf32>
    %54 = arith.addf %52, %53 : vector<136x128xf32>
    %cst_16 = arith.constant 1.000000e-01 : f32
    %55 = vector.broadcast %cst_16 : f32 to vector<136x128xf32>
    %56 = arith.mulf %54, %55 : vector<136x128xf32>
    %57 = math.floor %56 : vector<136x128xf32>
    %cst_17 = arith.constant 1.000000e+01 : f32
    %58 = vector.broadcast %cst_17 : f32 to vector<136x128xf32>
    %59 = arith.mulf %58, %57 : vector<136x128xf32>
    %60 = arith.subf %52, %59 : vector<136x128xf32>
    %61 = tpu.iota {dimensions = array<i32: 0>} : vector<8x136xi32>
    %62 = tpu.iota {dimensions = array<i32: 1>} : vector<8x136xi32>
    %c17_i32 = arith.constant 17 : i32
    %63 = vector.broadcast %c17_i32 : i32 to vector<8x136xi32>
    %64 = arith.muli %61, %63 : vector<8x136xi32>
    %65 = arith.cmpi sge, %62, %64 : vector<8x136xi32>
    %c1_i32 = arith.constant 1 : i32
    %66 = vector.broadcast %c1_i32 : i32 to vector<8x136xi32>
    %67 = arith.addi %61, %66 : vector<8x136xi32>
    %c17_i32_18 = arith.constant 17 : i32
    %68 = vector.broadcast %c17_i32_18 : i32 to vector<8x136xi32>
    %69 = arith.muli %67, %68 : vector<8x136xi32>
    %70 = arith.cmpi slt, %62, %69 : vector<8x136xi32>
    %71 = arith.andi %65, %70 : vector<8x136xi1>
    %72 = arith.extui %71 : vector<8x136xi1> to vector<8x136xi32>
    %73 = arith.sitofp %72 : vector<8x136xi32> to vector<8x136xf32>
    %cst_19 = arith.constant 0.000000e+00 : f32
    %74 = vector.broadcast %cst_19 : f32 to vector<8x128xf32>
    %cst_20 = arith.constant 0.000000e+00 : f32
    %75 = vector.broadcast %cst_20 : f32 to vector<136x128xf32>
    %76 = arith.cmpf oeq, %60, %75 : vector<136x128xf32>
    %cst_21 = arith.constant 0.000000e+00 : f32
    %77 = vector.broadcast %cst_21 : f32 to vector<136x128xf32>
    %78 = arith.select %76, %11, %77 : vector<136x128xi1>, vector<136x128xf32>
    %cst_22 = arith.constant dense<0.000000e+00> : vector<8x128xf32>
    %79 = tpu.matmul %73, %78, %cst_22 {dimension_numbers = #tpu.dot_dimension_numbers<[1], [0], [0], [1], [0, 0, 1, 1], [], []>} : vector<8x136xf32>, vector<136x128xf32>, vector<8x128xf32> -> vector<8x128xf32>
    %c127_i32_23 = arith.constant 127 : i32
    %80 = tpu.dynamic_rotate %79 by %c127_i32_23 dim 1 : vector<8x128xf32>, i32 -> vector<8x128xf32>
    %81 = arith.subf %80, %79 : vector<8x128xf32>
    %cst_24 = arith.constant 0.000000e+00 : f32
    %82 = vector.broadcast %cst_24 : f32 to vector<8x128xf32>
    %83 = arith.maximumf %81, %82 : vector<8x128xf32>
    %84 = arith.addf %74, %83 : vector<8x128xf32>
    %cst_25 = arith.constant 1.000000e+00 : f32
    %85 = vector.broadcast %cst_25 : f32 to vector<136x128xf32>
    %86 = arith.cmpf oeq, %60, %85 : vector<136x128xf32>
    %cst_26 = arith.constant 0.000000e+00 : f32
    %87 = vector.broadcast %cst_26 : f32 to vector<136x128xf32>
    %88 = arith.select %86, %11, %87 : vector<136x128xi1>, vector<136x128xf32>
    %cst_27 = arith.constant dense<0.000000e+00> : vector<8x128xf32>
    %89 = tpu.matmul %73, %88, %cst_27 {dimension_numbers = #tpu.dot_dimension_numbers<[1], [0], [0], [1], [0, 0, 1, 1], [], []>} : vector<8x136xf32>, vector<136x128xf32>, vector<8x128xf32> -> vector<8x128xf32>
    %c127_i32_28 = arith.constant 127 : i32
    %90 = tpu.dynamic_rotate %89 by %c127_i32_28 dim 1 : vector<8x128xf32>, i32 -> vector<8x128xf32>
    %91 = arith.subf %90, %89 : vector<8x128xf32>
    %cst_29 = arith.constant 0.000000e+00 : f32
    %92 = vector.broadcast %cst_29 : f32 to vector<8x128xf32>
    %93 = arith.maximumf %91, %92 : vector<8x128xf32>
    %94 = arith.addf %84, %93 : vector<8x128xf32>
    %cst_30 = arith.constant 2.000000e+00 : f32
    %95 = vector.broadcast %cst_30 : f32 to vector<136x128xf32>
    %96 = arith.cmpf oeq, %60, %95 : vector<136x128xf32>
    %cst_31 = arith.constant 0.000000e+00 : f32
    %97 = vector.broadcast %cst_31 : f32 to vector<136x128xf32>
    %98 = arith.select %96, %11, %97 : vector<136x128xi1>, vector<136x128xf32>
    %cst_32 = arith.constant dense<0.000000e+00> : vector<8x128xf32>
    %99 = tpu.matmul %73, %98, %cst_32 {dimension_numbers = #tpu.dot_dimension_numbers<[1], [0], [0], [1], [0, 0, 1, 1], [], []>} : vector<8x136xf32>, vector<136x128xf32>, vector<8x128xf32> -> vector<8x128xf32>
    %c127_i32_33 = arith.constant 127 : i32
    %100 = tpu.dynamic_rotate %99 by %c127_i32_33 dim 1 : vector<8x128xf32>, i32 -> vector<8x128xf32>
    %101 = arith.subf %100, %99 : vector<8x128xf32>
    %cst_34 = arith.constant 0.000000e+00 : f32
    %102 = vector.broadcast %cst_34 : f32 to vector<8x128xf32>
    %103 = arith.maximumf %101, %102 : vector<8x128xf32>
    %104 = arith.addf %94, %103 : vector<8x128xf32>
    %cst_35 = arith.constant 3.000000e+00 : f32
    %105 = vector.broadcast %cst_35 : f32 to vector<136x128xf32>
    %106 = arith.cmpf oeq, %60, %105 : vector<136x128xf32>
    %cst_36 = arith.constant 0.000000e+00 : f32
    %107 = vector.broadcast %cst_36 : f32 to vector<136x128xf32>
    %108 = arith.select %106, %11, %107 : vector<136x128xi1>, vector<136x128xf32>
    %cst_37 = arith.constant dense<0.000000e+00> : vector<8x128xf32>
    %109 = tpu.matmul %73, %108, %cst_37 {dimension_numbers = #tpu.dot_dimension_numbers<[1], [0], [0], [1], [0, 0, 1, 1], [], []>} : vector<8x136xf32>, vector<136x128xf32>, vector<8x128xf32> -> vector<8x128xf32>
    %c127_i32_38 = arith.constant 127 : i32
    %110 = tpu.dynamic_rotate %109 by %c127_i32_38 dim 1 : vector<8x128xf32>, i32 -> vector<8x128xf32>
    %111 = arith.subf %110, %109 : vector<8x128xf32>
    %cst_39 = arith.constant 0.000000e+00 : f32
    %112 = vector.broadcast %cst_39 : f32 to vector<8x128xf32>
    %113 = arith.maximumf %111, %112 : vector<8x128xf32>
    %114 = arith.addf %104, %113 : vector<8x128xf32>
    %cst_40 = arith.constant 4.000000e+00 : f32
    %115 = vector.broadcast %cst_40 : f32 to vector<136x128xf32>
    %116 = arith.cmpf oeq, %60, %115 : vector<136x128xf32>
    %cst_41 = arith.constant 0.000000e+00 : f32
    %117 = vector.broadcast %cst_41 : f32 to vector<136x128xf32>
    %118 = arith.select %116, %11, %117 : vector<136x128xi1>, vector<136x128xf32>
    %cst_42 = arith.constant dense<0.000000e+00> : vector<8x128xf32>
    %119 = tpu.matmul %73, %118, %cst_42 {dimension_numbers = #tpu.dot_dimension_numbers<[1], [0], [0], [1], [0, 0, 1, 1], [], []>} : vector<8x136xf32>, vector<136x128xf32>, vector<8x128xf32> -> vector<8x128xf32>
    %c127_i32_43 = arith.constant 127 : i32
    %120 = tpu.dynamic_rotate %119 by %c127_i32_43 dim 1 : vector<8x128xf32>, i32 -> vector<8x128xf32>
    %121 = arith.subf %120, %119 : vector<8x128xf32>
    %cst_44 = arith.constant 0.000000e+00 : f32
    %122 = vector.broadcast %cst_44 : f32 to vector<8x128xf32>
    %123 = arith.maximumf %121, %122 : vector<8x128xf32>
    %124 = arith.addf %114, %123 : vector<8x128xf32>
    %cst_45 = arith.constant 5.000000e+00 : f32
    %125 = vector.broadcast %cst_45 : f32 to vector<136x128xf32>
    %126 = arith.cmpf oeq, %60, %125 : vector<136x128xf32>
    %cst_46 = arith.constant 0.000000e+00 : f32
    %127 = vector.broadcast %cst_46 : f32 to vector<136x128xf32>
    %128 = arith.select %126, %11, %127 : vector<136x128xi1>, vector<136x128xf32>
    %cst_47 = arith.constant dense<0.000000e+00> : vector<8x128xf32>
    %129 = tpu.matmul %73, %128, %cst_47 {dimension_numbers = #tpu.dot_dimension_numbers<[1], [0], [0], [1], [0, 0, 1, 1], [], []>} : vector<8x136xf32>, vector<136x128xf32>, vector<8x128xf32> -> vector<8x128xf32>
    %c127_i32_48 = arith.constant 127 : i32
    %130 = tpu.dynamic_rotate %129 by %c127_i32_48 dim 1 : vector<8x128xf32>, i32 -> vector<8x128xf32>
    %131 = arith.subf %130, %129 : vector<8x128xf32>
    %cst_49 = arith.constant 0.000000e+00 : f32
    %132 = vector.broadcast %cst_49 : f32 to vector<8x128xf32>
    %133 = arith.maximumf %131, %132 : vector<8x128xf32>
    %134 = arith.addf %124, %133 : vector<8x128xf32>
    %cst_50 = arith.constant 6.000000e+00 : f32
    %135 = vector.broadcast %cst_50 : f32 to vector<136x128xf32>
    %136 = arith.cmpf oeq, %60, %135 : vector<136x128xf32>
    %cst_51 = arith.constant 0.000000e+00 : f32
    %137 = vector.broadcast %cst_51 : f32 to vector<136x128xf32>
    %138 = arith.select %136, %11, %137 : vector<136x128xi1>, vector<136x128xf32>
    %cst_52 = arith.constant dense<0.000000e+00> : vector<8x128xf32>
    %139 = tpu.matmul %73, %138, %cst_52 {dimension_numbers = #tpu.dot_dimension_numbers<[1], [0], [0], [1], [0, 0, 1, 1], [], []>} : vector<8x136xf32>, vector<136x128xf32>, vector<8x128xf32> -> vector<8x128xf32>
    %c127_i32_53 = arith.constant 127 : i32
    %140 = tpu.dynamic_rotate %139 by %c127_i32_53 dim 1 : vector<8x128xf32>, i32 -> vector<8x128xf32>
    %141 = arith.subf %140, %139 : vector<8x128xf32>
    %cst_54 = arith.constant 0.000000e+00 : f32
    %142 = vector.broadcast %cst_54 : f32 to vector<8x128xf32>
    %143 = arith.maximumf %141, %142 : vector<8x128xf32>
    %144 = arith.addf %134, %143 : vector<8x128xf32>
    %cst_55 = arith.constant 7.000000e+00 : f32
    %145 = vector.broadcast %cst_55 : f32 to vector<136x128xf32>
    %146 = arith.cmpf oeq, %60, %145 : vector<136x128xf32>
    %cst_56 = arith.constant 0.000000e+00 : f32
    %147 = vector.broadcast %cst_56 : f32 to vector<136x128xf32>
    %148 = arith.select %146, %11, %147 : vector<136x128xi1>, vector<136x128xf32>
    %cst_57 = arith.constant dense<0.000000e+00> : vector<8x128xf32>
    %149 = tpu.matmul %73, %148, %cst_57 {dimension_numbers = #tpu.dot_dimension_numbers<[1], [0], [0], [1], [0, 0, 1, 1], [], []>} : vector<8x136xf32>, vector<136x128xf32>, vector<8x128xf32> -> vector<8x128xf32>
    %c127_i32_58 = arith.constant 127 : i32
    %150 = tpu.dynamic_rotate %149 by %c127_i32_58 dim 1 : vector<8x128xf32>, i32 -> vector<8x128xf32>
    %151 = arith.subf %150, %149 : vector<8x128xf32>
    %cst_59 = arith.constant 0.000000e+00 : f32
    %152 = vector.broadcast %cst_59 : f32 to vector<8x128xf32>
    %153 = arith.maximumf %151, %152 : vector<8x128xf32>
    %154 = arith.addf %144, %153 : vector<8x128xf32>
    %cst_60 = arith.constant 8.000000e+00 : f32
    %155 = vector.broadcast %cst_60 : f32 to vector<136x128xf32>
    %156 = arith.cmpf oeq, %60, %155 : vector<136x128xf32>
    %cst_61 = arith.constant 0.000000e+00 : f32
    %157 = vector.broadcast %cst_61 : f32 to vector<136x128xf32>
    %158 = arith.select %156, %11, %157 : vector<136x128xi1>, vector<136x128xf32>
    %cst_62 = arith.constant dense<0.000000e+00> : vector<8x128xf32>
    %159 = tpu.matmul %73, %158, %cst_62 {dimension_numbers = #tpu.dot_dimension_numbers<[1], [0], [0], [1], [0, 0, 1, 1], [], []>} : vector<8x136xf32>, vector<136x128xf32>, vector<8x128xf32> -> vector<8x128xf32>
    %c127_i32_63 = arith.constant 127 : i32
    %160 = tpu.dynamic_rotate %159 by %c127_i32_63 dim 1 : vector<8x128xf32>, i32 -> vector<8x128xf32>
    %161 = arith.subf %160, %159 : vector<8x128xf32>
    %cst_64 = arith.constant 0.000000e+00 : f32
    %162 = vector.broadcast %cst_64 : f32 to vector<8x128xf32>
    %163 = arith.maximumf %161, %162 : vector<8x128xf32>
    %164 = arith.addf %154, %163 : vector<8x128xf32>
    %cst_65 = arith.constant 9.000000e+00 : f32
    %165 = vector.broadcast %cst_65 : f32 to vector<136x128xf32>
    %166 = arith.cmpf oeq, %60, %165 : vector<136x128xf32>
    %cst_66 = arith.constant 0.000000e+00 : f32
    %167 = vector.broadcast %cst_66 : f32 to vector<136x128xf32>
    %168 = arith.select %166, %11, %167 : vector<136x128xi1>, vector<136x128xf32>
    %cst_67 = arith.constant dense<0.000000e+00> : vector<8x128xf32>
    %169 = tpu.matmul %73, %168, %cst_67 {dimension_numbers = #tpu.dot_dimension_numbers<[1], [0], [0], [1], [0, 0, 1, 1], [], []>} : vector<8x136xf32>, vector<136x128xf32>, vector<8x128xf32> -> vector<8x128xf32>
    %c127_i32_68 = arith.constant 127 : i32
    %170 = tpu.dynamic_rotate %169 by %c127_i32_68 dim 1 : vector<8x128xf32>, i32 -> vector<8x128xf32>
    %171 = arith.subf %170, %169 : vector<8x128xf32>
    %cst_69 = arith.constant 0.000000e+00 : f32
    %172 = vector.broadcast %cst_69 : f32 to vector<8x128xf32>
    %173 = arith.maximumf %171, %172 : vector<8x128xf32>
    %174 = arith.addf %164, %173 : vector<8x128xf32>
    %175 = tpu.iota {dimensions = array<i32: 1>} : vector<1x128xi32>
    %c14_i32 = arith.constant 14 : i32
    %176 = vector.broadcast %c14_i32 : i32 to vector<1x128xi32>
    %177 = arith.cmpi slt, %175, %176 : vector<1x128xi32>
    %cst_70 = arith.constant 0xFF800000 : f32
    %178 = vector.shape_cast %177 : vector<1x128xi1> to vector<1x128xi1>
    %179 = vector.broadcast %178 : vector<1x128xi1> to vector<8x128xi1>
    %180 = vector.broadcast %cst_70 : f32 to vector<8x128xf32>
    %181 = arith.select %179, %174, %180 : vector<8x128xi1>, vector<8x128xf32>
    %cst_71 = arith.constant dense<0xFF800000> : vector<8xf32>
    %182 = vector.multi_reduction <maximumf>, %181, %cst_71 [1] : vector<8x128xf32> to vector<8xf32>
    %183 = vector.shape_cast %182 : vector<8xf32> to vector<8x1xf32>
    %cst_72 = arith.constant 0.000000e+00 : f32
    %184 = vector.broadcast %cst_72 : f32 to vector<8x1xf32>
    %185 = arith.cmpf ogt, %183, %184 : vector<8x1xf32>
    %cst_73 = arith.constant 1.000000e+00 : f32
    %186 = vector.broadcast %cst_73 : f32 to vector<8x1xf32>
    %187 = arith.select %185, %183, %186 : vector<8x1xi1>, vector<8x1xf32>
    %cst_74 = arith.constant 1.000000e+00 : f32
    %188 = vector.broadcast %cst_74 : f32 to vector<8x1xf32>
    %189 = arith.divf %188, %187 : vector<8x1xf32>
    %190 = vector.broadcast %189 : vector<8x1xf32> to vector<8x128xf32>
    %191 = arith.mulf %174, %190 : vector<8x128xf32>
    %cst_75 = arith.constant 0.000000e+00 : f32
    %192 = vector.shape_cast %177 : vector<1x128xi1> to vector<1x128xi1>
    %193 = vector.broadcast %192 : vector<1x128xi1> to vector<8x128xi1>
    %194 = vector.broadcast %cst_75 : f32 to vector<8x128xf32>
    %195 = arith.select %193, %191, %194 : vector<8x128xi1>, vector<8x128xf32>
    %c0_76 = arith.constant 0 : index
    %c0_77 = arith.constant 0 : index
    %196 = vector.load %arg3[%c0_76, %c0_77] : memref<8x128xf32, #tpu.memory_space<vmem>>, vector<8x128xf32>
    tpu.vector_store %arg3[%c0_76, %c0_77], %195 {strides = array<i32>} : memref<8x128xf32, #tpu.memory_space<vmem>>, vector<8x128xf32>,
    %cst_78 = arith.constant dense<0.000000e+00> : vector<8xf32>
    %197 = vector.multi_reduction <add>, %195, %cst_78 [1] : vector<8x128xf32> to vector<8xf32>
    %198 = vector.shape_cast %197 : vector<8xf32> to vector<8x1xf32>
    %cst_79 = arith.constant 0.0714285746 : f32
    %199 = vector.broadcast %cst_79 : f32 to vector<8x1xf32>
    %200 = arith.mulf %198, %199 : vector<8x1xf32>
    %c127_i32_80 = arith.constant 127 : i32
    %201 = tpu.dynamic_rotate %195 by %c127_i32_80 dim 1 : vector<8x128xf32>, i32 -> vector<8x128xf32>
    %c127_i32_81 = arith.constant 127 : i32
    %202 = tpu.dynamic_rotate %201 by %c127_i32_81 dim 1 : vector<8x128xf32>, i32 -> vector<8x128xf32>
    %c127_i32_82 = arith.constant 127 : i32
    %203 = tpu.dynamic_rotate %202 by %c127_i32_82 dim 1 : vector<8x128xf32>, i32 -> vector<8x128xf32>
    %c127_i32_83 = arith.constant 127 : i32
    %204 = tpu.dynamic_rotate %203 by %c127_i32_83 dim 1 : vector<8x128xf32>, i32 -> vector<8x128xf32>
    %c127_i32_84 = arith.constant 127 : i32
    %205 = tpu.dynamic_rotate %204 by %c127_i32_84 dim 1 : vector<8x128xf32>, i32 -> vector<8x128xf32>
    %206 = arith.addf %195, %201 : vector<8x128xf32>
    %207 = arith.addf %206, %202 : vector<8x128xf32>
    %208 = arith.addf %207, %203 : vector<8x128xf32>
    %cst_85 = arith.constant 2.500000e-01 : f32
    %209 = vector.broadcast %cst_85 : f32 to vector<8x128xf32>
    %210 = arith.mulf %208, %209 : vector<8x128xf32>
    %c11_i32 = arith.constant 11 : i32
    %211 = vector.broadcast %c11_i32 : i32 to vector<1x128xi32>
    %212 = arith.cmpi slt, %175, %211 : vector<1x128xi32>
    %cst_86 = arith.constant 0.000000e+00 : f32
    %213 = vector.shape_cast %212 : vector<1x128xi1> to vector<1x128xi1>
    %214 = vector.broadcast %213 : vector<1x128xi1> to vector<8x128xi1>
    %215 = vector.broadcast %cst_86 : f32 to vector<8x128xf32>
    %216 = arith.select %214, %210, %215 : vector<8x128xi1>, vector<8x128xf32>
    %217 = arith.maximumf %195, %201 : vector<8x128xf32>
    %218 = arith.maximumf %202, %203 : vector<8x128xf32>
    %219 = arith.maximumf %217, %218 : vector<8x128xf32>
    %220 = arith.maximumf %204, %205 : vector<8x128xf32>
    %221 = arith.maximumf %219, %220 : vector<8x128xf32>
    %c9_i32 = arith.constant 9 : i32
    %222 = vector.broadcast %c9_i32 : i32 to vector<1x128xi32>
    %223 = arith.cmpi slt, %175, %222 : vector<1x128xi32>
    %cst_87 = arith.constant 0.000000e+00 : f32
    %224 = vector.shape_cast %223 : vector<1x128xi1> to vector<1x128xi1>
    %225 = vector.broadcast %224 : vector<1x128xi1> to vector<8x128xi1>
    %226 = vector.broadcast %cst_87 : f32 to vector<8x128xf32>
    %227 = arith.select %225, %221, %226 : vector<8x128xi1>, vector<8x128xf32>
    %228 = arith.subf %227, %216 : vector<8x128xf32>
    %cst_88 = arith.constant 1.000000e-01 : f32
    %229 = vector.broadcast %cst_88 : f32 to vector<8x1xf32>
    %230 = arith.mulf %229, %200 : vector<8x1xf32>
    %231 = vector.broadcast %230 : vector<8x1xf32> to vector<8x128xf32>
    %232 = arith.cmpf ogt, %228, %231 : vector<8x128xf32>
    %233 = arith.cmpf oeq, %227, %195 : vector<8x128xf32>
    %234 = arith.andi %232, %233 : vector<8x128xi1>
    %235 = arith.extui %234 : vector<8x128xi1> to vector<8x128xi32>
    %236 = arith.sitofp %235 : vector<8x128xi32> to vector<8x128xf32>
    %c127_i32_89 = arith.constant 127 : i32
    %237 = tpu.dynamic_rotate %236 by %c127_i32_89 dim 1 : vector<8x128xf32>, i32 -> vector<8x128xf32>
    %238 = arith.cmpf one, %237, %236 : vector<8x128xf32>
    %c13_i32 = arith.constant 13 : i32
    %239 = vector.broadcast %c13_i32 : i32 to vector<1x128xi32>
    %240 = arith.cmpi slt, %175, %239 : vector<1x128xi32>
    %241 = vector.broadcast %240 : vector<1x128xi1> to vector<8x128xi1>
    %242 = arith.andi %238, %241 : vector<8x128xi1>
    %cst_90 = arith.constant 0.000000e+00 : f32
    %243 = vector.broadcast %cst_90 : f32 to vector<8x128xf32>
    %244 = arith.select %242, %236, %243 : vector<8x128xi1>, vector<8x128xf32>
    %245 = arith.fptosi %244 : vector<8x128xf32> to vector<8x128xi32>
    %c0_91 = arith.constant 0 : index
    %c0_92 = arith.constant 0 : index
    %246 = vector.load %arg2[%c0_91, %c0_92] : memref<8x128xi32, #tpu.memory_space<vmem>>, vector<8x128xi32>
    tpu.vector_store %arg2[%c0_91, %c0_92], %245 {strides = array<i32>} : memref<8x128xi32, #tpu.memory_space<vmem>>, vector<8x128xi32>,
    return
  }
  func.func @transform_0(%arg0: i32) -> (i32, i32, i32) {
    %c0_i32 = arith.constant 0 : i32
    %c0_i32_0 = arith.constant 0 : i32
    %c0_i32_1 = arith.constant 0 : i32
    return %c0_i32, %arg0, %c0_i32_0 : i32, i32, i32
  }
  func.func @transform_1(%arg0: i32) -> (i32, i32) {
    %c0_i32 = arith.constant 0 : i32
    %c0_i32_0 = arith.constant 0 : i32
    return %arg0, %c0_i32 : i32, i32
  }
  func.func @transform_2(%arg0: i32) -> (i32, i32) {
    %c0_i32 = arith.constant 0 : i32
    %c0_i32_0 = arith.constant 0 : i32
    return %arg0, %c0_i32 : i32, i32
  }
}

</mosaic_0001>

<llo_original>
// kernel: tpu_custom_call.1
$region0: #{tpu_custom_call.1}
  #allocation0 [shape = 'u32[]', space=smem, size = 0x4, offset = 0x4, fixed_abs, tag = 'smem constant byte address 0x4 - core index']
  #allocation1 [shape = 'u32[144,128]{1,0:T(1,128)}', space=vmem, size = 0x12000, scoped, tag = 'internal scratch']
  %s0 = inlined_call_operand.hbm [shape: f32[2,136,128], index: 0, kind: input, shape index: {}]
  %s1 = inlined_call_operand.hbm [shape: s32[8,128], index: 1, kind: output, shape index: {0}]
  %s2 = inlined_call_operand.hbm [shape: f32[8,128], index: 2, kind: output, shape index: {1}]
  %3 = xla_tuple %s1, %s2
  %s4 = sld [smem:[#allocation0]]
  $region26: #{tpu_custom_call.1} parent=0
    _
  %s6 = ssub.s32 1, %s4
  %s7 = scalar_select 0, %s6, %s4
  $region1: #{tpu_custom_call.1} parent=0
    #allocation2 [shape = 'u8[139264]{0}', space=vmem, size = 0x22000, scoped, tag = 'input window, operand 0, single buffered']
    #allocation3 [shape = 's32[1]{0}', space=sflag, size = 0x4, scoped, tag = 'scoped memory for tpu_custom_call.1']
    #allocation4 [shape = 's32[1]{0}', space=sflag, size = 0x4, scoped, tag = 'scoped memory for tpu_custom_call.1']
    #allocation5 [shape = 'u8[4096]{0}', space=vmem, size = 0x1000, scoped, tag = 'output window, operand 0, single buffered']
    #allocation6 [shape = 'u8[4096]{0}', space=vmem, size = 0x1000, scoped, tag = 'output window, operand 1, single buffered']
    #allocation7 [shape = 's32[1]{0}', space=sflag, size = 0x4, scoped, tag = 'scoped memory for tpu_custom_call.1']
    %8 = vsyncpa [#allocation3], 0
    %9 = vsyncpa [#allocation4], 0
    %10 = vsyncpa [#allocation7], 0
    // Predicated region
    $region2: #{tpu_custom_call.1} parent=1 // pred_check
      _
    $region3: #{tpu_custom_call.1} parent=1 // pred_check_branch
      %12 = sbr.rel (0) target = $region5
    $region4: #{tpu_custom_call.1} parent=1 // pred_region
      %s14 = ssub.s32 4352, 4352
      %15 = vsyncadd [#allocation3], %s14
      %s16 = sshll.u32 [#allocation2], 4
      %s17 = int_to_ptr.vmem [resolvable:$true] %s16
      %22 = dma.hbm_to_vmem [thread:$0]  %s0, 4352, %s17, [#allocation3], 128, 128, 8
    $region5: #{tpu_custom_call.1} parent=1 // pred_fallthru
      _
    // Predicated region
    $region6: #{tpu_custom_call.1} parent=1 // pred_check
      _
    $region7: #{tpu_custom_call.1} parent=1 // pred_check_branch
      %24 = sbr.rel (0) target = $region9
    $region8: #{tpu_custom_call.1} parent=1 // pred_region
      %25 = dma.done [#allocation3], 4352
    $region9: #{tpu_custom_call.1} parent=1 // pred_fallthru
      _
    %v26 = vld [vmem:[#allocation2] sm:$0xff]
    %v27 = vld [vmem:[#allocation2 + $0x8] sm:$0xff]
    %v28 = vld [vmem:[#allocation2 + $0x10] sm:$0xff]
    %v29 = vld [vmem:[#allocation2 + $0x18] sm:$0xff]
    %v30 = vld [vmem:[#allocation2 + $0x20] sm:$0xff]
    %v31 = vld [vmem:[#allocation2 + $0x28] sm:$0xff]
    %v32 = vld [vmem:[#allocation2 + $0x30] sm:$0xff]
    %v33 = vld [vmem:[#allocation2 + $0x38] sm:$0xff]
    %v34 = vld [vmem:[#allocation2 + $0x40] sm:$0xff]
    %v35 = vld [vmem:[#allocation2 + $0x48] sm:$0xff]
    %v36 = vld [vmem:[#allocation2 + $0x50] sm:$0xff]
    %v37 = vld [vmem:[#allocation2 + $0x58] sm:$0xff]
    %v38 = vld [vmem:[#allocation2 + $0x60] sm:$0xff]
    %v39 = vld [vmem:[#allocation2 + $0x68] sm:$0xff]
    %v40 = vld [vmem:[#allocation2 + $0x70] sm:$0xff]
    %v41 = vld [vmem:[#allocation2 + $0x78] sm:$0xff]
    %v42 = vld [vmem:[#allocation2 + $0x80] sm:$0xff]
    %s43 = scalar_lea.vmem [#allocation2], 136
    %v44 = vld [vmem:[%s43] sm:$0xff]
    %v45 = vld [vmem:[%s43 + $0x8] sm:$0xff]
    %v46 = vld [vmem:[%s43 + $0x10] sm:$0xff]
    %v47 = vld [vmem:[%s43 + $0x18] sm:$0xff]
    %v48 = vld [vmem:[%s43 + $0x20] sm:$0xff]
    %v49 = vld [vmem:[%s43 + $0x28] sm:$0xff]
    %v50 = vld [vmem:[%s43 + $0x30] sm:$0xff]
    %v51 = vld [vmem:[%s43 + $0x38] sm:$0xff]
    %v52 = vld [vmem:[%s43 + $0x40] sm:$0xff]
    %v53 = vld [vmem:[%s43 + $0x48] sm:$0xff]
    %v54 = vld [vmem:[%s43 + $0x50] sm:$0xff]
    %v55 = vld [vmem:[%s43 + $0x58] sm:$0xff]
    %v56 = vld [vmem:[%s43 + $0x60] sm:$0xff]
    %v57 = vld [vmem:[%s43 + $0x68] sm:$0xff]
    %v58 = vld [vmem:[%s43 + $0x70] sm:$0xff]
    %v59 = vld [vmem:[%s43 + $0x78] sm:$0xff]
    %v60 = vld [vmem:[%s43 + $0x80] sm:$0xff]
    %61 = vrot.lane.b32.xlu0 %v26, 127
    %v62 = vpop.permute.xlu0 %61
    %63 = vrot.lane.b32.xlu0 %v27, 127
    %v64 = vpop.permute.xlu0 %63
    %65 = vrot.lane.b32.xlu0 %v28, 127
    %v66 = vpop.permute.xlu0 %65
    %67 = vrot.lane.b32.xlu0 %v29, 127
    %v68 = vpop.permute.xlu0 %67
    %69 = vrot.lane.b32.xlu0 %v30, 127
    %v70 = vpop.permute.xlu0 %69
    %71 = vrot.lane.b32.xlu0 %v31, 127
    %v72 = vpop.permute.xlu0 %71
    %73 = vrot.lane.b32.xlu0 %v32, 127
    %v74 = vpop.permute.xlu0 %73
    %75 = vrot.lane.b32.xlu0 %v33, 127
    %v76 = vpop.permute.xlu0 %75
    %77 = vrot.lane.b32.xlu0 %v34, 127
    %v78 = vpop.permute.xlu0 %77
    %79 = vrot.lane.b32.xlu0 %v35, 127
    %v80 = vpop.permute.xlu0 %79
    %81 = vrot.lane.b32.xlu0 %v36, 127
    %v82 = vpop.permute.xlu0 %81
    %83 = vrot.lane.b32.xlu0 %v37, 127
    %v84 = vpop.permute.xlu0 %83
    %85 = vrot.lane.b32.xlu0 %v38, 127
    %v86 = vpop.permute.xlu0 %85
    %87 = vrot.lane.b32.xlu0 %v39, 127
    %v88 = vpop.permute.xlu0 %87
    %89 = vrot.lane.b32.xlu0 %v40, 127
    %v90 = vpop.permute.xlu0 %89
    %91 = vrot.lane.b32.xlu0 %v41, 127
    %v92 = vpop.permute.xlu0 %91
    %93 = vrot.lane.b32.xlu0 %v42, 127
    %v94 = vpop.permute.xlu0 %93
    %v95 = vsub.f32 %v62, %v26
    %v96 = vsub.f32 %v64, %v27
    %v97 = vsub.f32 %v66, %v28
    %v98 = vsub.f32 %v68, %v29
    %v99 = vsub.f32 %v70, %v30
    %v100 = vsub.f32 %v72, %v31
    %v101 = vsub.f32 %v74, %v32
    %v102 = vsub.f32 %v76, %v33
    %v103 = vsub.f32 %v78, %v34
    %v104 = vsub.f32 %v80, %v35
    %v105 = vsub.f32 %v82, %v36
    %v106 = vsub.f32 %v84, %v37
    %v107 = vsub.f32 %v86, %v38
    %v108 = vsub.f32 %v88, %v39
    %v109 = vsub.f32 %v90, %v40
    %v110 = vsub.f32 %v92, %v41
    %v111 = vsub.f32 %v94, %v42
    %112 = vrot.lane.b32.xlu0 %v44, 127
    %v113 = vpop.permute.xlu0 %112
    %114 = vrot.lane.b32.xlu0 %v45, 127
    %v115 = vpop.permute.xlu0 %114
    %116 = vrot.lane.b32.xlu0 %v46, 127
    %v117 = vpop.permute.xlu0 %116
    %118 = vrot.lane.b32.xlu0 %v47, 127
    %v119 = vpop.permute.xlu0 %118
    %120 = vrot.lane.b32.xlu0 %v48, 127
    %v121 = vpop.permute.xlu0 %120
    %122 = vrot.lane.b32.xlu0 %v49, 127
    %v123 = vpop.permute.xlu0 %122
    %124 = vrot.lane.b32.xlu0 %v50, 127
    %v125 = vpop.permute.xlu0 %124
    %126 = vrot.lane.b32.xlu0 %v51, 127
    %v127 = vpop.permute.xlu0 %126
    %128 = vrot.lane.b32.xlu0 %v52, 127
    %v129 = vpop.permute.xlu0 %128
    %130 = vrot.lane.b32.xlu0 %v53, 127
    %v131 = vpop.permute.xlu0 %130
    %132 = vrot.lane.b32.xlu0 %v54, 127
    %v133 = vpop.permute.xlu0 %132
    %134 = vrot.lane.b32.xlu0 %v55, 127
    %v135 = vpop.permute.xlu0 %134
    %136 = vrot.lane.b32.xlu0 %v56, 127
    %v137 = vpop.permute.xlu0 %136
    %138 = vrot.lane.b32.xlu0 %v57, 127
    %v139 = vpop.permute.xlu0 %138
    %140 = vrot.lane.b32.xlu0 %v58, 127
    %v141 = vpop.permute.xlu0 %140
    %142 = vrot.lane.b32.xlu0 %v59, 127
    %v143 = vpop.permute.xlu0 %142
    %144 = vrot.lane.b32.xlu0 %v60, 127
    %v145 = vpop.permute.xlu0 %144
    %v146 = vsub.f32 %v113, %v44
    %v147 = vsub.f32 %v115, %v45
    %v148 = vsub.f32 %v117, %v46
    %v149 = vsub.f32 %v119, %v47
    %v150 = vsub.f32 %v121, %v48
    %v151 = vsub.f32 %v123, %v49
    %v152 = vsub.f32 %v125, %v50
    %v153 = vsub.f32 %v127, %v51
    %v154 = vsub.f32 %v129, %v52
    %v155 = vsub.f32 %v131, %v53
    %v156 = vsub.f32 %v133, %v54
    %v157 = vsub.f32 %v135, %v55
    %v158 = vsub.f32 %v137, %v56
    %v159 = vsub.f32 %v139, %v57
    %v160 = vsub.f32 %v141, %v58
    %v161 = vsub.f32 %v143, %v59
    %v162 = vsub.f32 %v145, %v60
    %v163 = vmul.f32 %v95, %v95
    %v164 = vmul.f32 %v96, %v96
    %v165 = vmul.f32 %v97, %v97
    %v166 = vmul.f32 %v98, %v98
    %v167 = vmul.f32 %v99, %v99
    %v168 = vmul.f32 %v100, %v100
    %v169 = vmul.f32 %v101, %v101
    %v170 = vmul.f32 %v102, %v102
    %v171 = vmul.f32 %v103, %v103
    %v172 = vmul.f32 %v104, %v104
    %v173 = vmul.f32 %v105, %v105
    %v174 = vmul.f32 %v106, %v106
    %v175 = vmul.f32 %v107, %v107
    %v176 = vmul.f32 %v108, %v108
    %v177 = vmul.f32 %v109, %v109
    %v178 = vmul.f32 %v110, %v110
    %v179 = vmul.f32 %v111, %v111
    %v180 = vmul.f32 %v146, %v146
    %v181 = vmul.f32 %v147, %v147
    %v182 = vmul.f32 %v148, %v148
    %v183 = vmul.f32 %v149, %v149
    %v184 = vmul.f32 %v150, %v150
    %v185 = vmul.f32 %v151, %v151
    %v186 = vmul.f32 %v152, %v152
    %v187 = vmul.f32 %v153, %v153
    %v188 = vmul.f32 %v154, %v154
    %v189 = vmul.f32 %v155, %v155
    %v190 = vmul.f32 %v156, %v156
    %v191 = vmul.f32 %v157, %v157
    %v192 = vmul.f32 %v158, %v158
    %v193 = vmul.f32 %v159, %v159
    %v194 = vmul.f32 %v160, %v160
    %v195 = vmul.f32 %v161, %v161
    %v196 = vmul.f32 %v162, %v162
    %v197 = vadd.f32 %v163, %v180
    %v198 = vadd.f32 %v164, %v181
    %v199 = vadd.f32 %v165, %v182
    %v200 = vadd.f32 %v166, %v183
    %v201 = vadd.f32 %v167, %v184
    %v202 = vadd.f32 %v168, %v185
    %v203 = vadd.f32 %v169, %v186
    %v204 = vadd.f32 %v170, %v187
    %v205 = vadd.f32 %v171, %v188
    %v206 = vadd.f32 %v172, %v189
    %v207 = vadd.f32 %v173, %v190
    %v208 = vadd.f32 %v174, %v191
    %v209 = vadd.f32 %v175, %v192
    %v210 = vadd.f32 %v176, %v193
    %v211 = vadd.f32 %v177, %v194
    %v212 = vadd.f32 %v178, %v195
    %v213 = vadd.f32 %v179, %v196
    %v214 = vrsqrt.pop %v197
    %v215 = vmul.f32 %v197, %v214
    %vm216 = vcmp.eq.f32.partialorder %v197, inf
    %v217 = vsel %vm216, %v197, %v215
    %vm218 = vcmp.eq.f32.partialorder %v197, 0.0
    %v219 = vand.u32 %v197, 2147483648
    %v220 = vsel %vm218, %v219, %v217
    %v221 = vrsqrt.pop %v198
    %v222 = vmul.f32 %v198, %v221
    %vm223 = vcmp.eq.f32.partialorder %v198, inf
    %v224 = vsel %vm223, %v198, %v222
    %vm225 = vcmp.eq.f32.partialorder %v198, 0.0
    %v226 = vand.u32 %v198, 2147483648
    %v227 = vsel %vm225, %v226, %v224
    %v228 = vrsqrt.pop %v199
    %v229 = vmul.f32 %v199, %v228
    %vm230 = vcmp.eq.f32.partialorder %v199, inf
    %v231 = vsel %vm230, %v199, %v229
    %vm232 = vcmp.eq.f32.partialorder %v199, 0.0
    %v233 = vand.u32 %v199, 2147483648
    %v234 = vsel %vm232, %v233, %v231
    %v235 = vrsqrt.pop %v200
    %v236 = vmul.f32 %v200, %v235
    %vm237 = vcmp.eq.f32.partialorder %v200, inf
    %v238 = vsel %vm237, %v200, %v236
    %vm239 = vcmp.eq.f32.partialorder %v200, 0.0
    %v240 = vand.u32 %v200, 2147483648
    %v241 = vsel %vm239, %v240, %v238
    %v242 = vrsqrt.pop %v201
    %v243 = vmul.f32 %v201, %v242
    %vm244 = vcmp.eq.f32.partialorder %v201, inf
    %v245 = vsel %vm244, %v201, %v243
    %vm246 = vcmp.eq.f32.partialorder %v201, 0.0
    %v247 = vand.u32 %v201, 2147483648
    %v248 = vsel %vm246, %v247, %v245
    %v249 = vrsqrt.pop %v202
    %v250 = vmul.f32 %v202, %v249
    %vm251 = vcmp.eq.f32.partialorder %v202, inf
    %v252 = vsel %vm251, %v202, %v250
    %vm253 = vcmp.eq.f32.partialorder %v202, 0.0
    %v254 = vand.u32 %v202, 2147483648
    %v255 = vsel %vm253, %v254, %v252
    %v256 = vrsqrt.pop %v203
    %v257 = vmul.f32 %v203, %v256
    %vm258 = vcmp.eq.f32.partialorder %v203, inf
    %v259 = vsel %vm258, %v203, %v257
    %vm260 = vcmp.eq.f32.partialorder %v203, 0.0
    %v261 = vand.u32 %v203, 2147483648
    %v262 = vsel %vm260, %v261, %v259
    %v263 = vrsqrt.pop %v204
    %v264 = vmul.f32 %v204, %v263
    %vm265 = vcmp.eq.f32.partialorder %v204, inf
    %v266 = vsel %vm265, %v204, %v264
    %vm267 = vcmp.eq.f32.partialorder %v204, 0.0
    %v268 = vand.u32 %v204, 2147483648
    %v269 = vsel %vm267, %v268, %v266
    %v270 = vrsqrt.pop %v205
    %v271 = vmul.f32 %v205, %v270
    %vm272 = vcmp.eq.f32.partialorder %v205, inf
    %v273 = vsel %vm272, %v205, %v271
    %vm274 = vcmp.eq.f32.partialorder %v205, 0.0
    %v275 = vand.u32 %v205, 2147483648
    %v276 = vsel %vm274, %v275, %v273
    %v277 = vrsqrt.pop %v206
    %v278 = vmul.f32 %v206, %v277
    %vm279 = vcmp.eq.f32.partialorder %v206, inf
    %v280 = vsel %vm279, %v206, %v278
    %vm281 = vcmp.eq.f32.partialorder %v206, 0.0
    %v282 = vand.u32 %v206, 2147483648
    %v283 = vsel %vm281, %v282, %v280
    %v284 = vrsqrt.pop %v207
    %v285 = vmul.f32 %v207, %v284
    %vm286 = vcmp.eq.f32.partialorder %v207, inf
    %v287 = vsel %vm286, %v207, %v285
    %vm288 = vcmp.eq.f32.partialorder %v207, 0.0
    %v289 = vand.u32 %v207, 2147483648
    %v290 = vsel %vm288, %v289, %v287
    %v291 = vrsqrt.pop %v208
    %v292 = vmul.f32 %v208, %v291
    %vm293 = vcmp.eq.f32.partialorder %v208, inf
    %v294 = vsel %vm293, %v208, %v292
    %vm295 = vcmp.eq.f32.partialorder %v208, 0.0
    %v296 = vand.u32 %v208, 2147483648
    %v297 = vsel %vm295, %v296, %v294
    %v298 = vrsqrt.pop %v209
    %v299 = vmul.f32 %v209, %v298
    %vm300 = vcmp.eq.f32.partialorder %v209, inf
    %v301 = vsel %vm300, %v209, %v299
    %vm302 = vcmp.eq.f32.partialorder %v209, 0.0
    %v303 = vand.u32 %v209, 2147483648
    %v304 = vsel %vm302, %v303, %v301
    %v305 = vrsqrt.pop %v210
    %v306 = vmul.f32 %v210, %v305
    %vm307 = vcmp.eq.f32.partialorder %v210, inf
    %v308 = vsel %vm307, %v210, %v306
    %vm309 = vcmp.eq.f32.partialorder %v210, 0.0
    %v310 = vand.u32 %v210, 2147483648
    %v311 = vsel %vm309, %v310, %v308
    %v312 = vrsqrt.pop %v211
    %v313 = vmul.f32 %v211, %v312
    %vm314 = vcmp.eq.f32.partialorder %v211, inf
    %v315 = vsel %vm314, %v211, %v313
    %vm316 = vcmp.eq.f32.partialorder %v211, 0.0
    %v317 = vand.u32 %v211, 2147483648
    %v318 = vsel %vm316, %v317, %v315
    %v319 = vrsqrt.pop %v212
    %v320 = vmul.f32 %v212, %v319
    %vm321 = vcmp.eq.f32.partialorder %v212, inf
    %v322 = vsel %vm321, %v212, %v320
    %vm323 = vcmp.eq.f32.partialorder %v212, 0.0
    %v324 = vand.u32 %v212, 2147483648
    %v325 = vsel %vm323, %v324, %v322
    %v326 = vrsqrt.pop %v213
    %v327 = vmul.f32 %v213, %v326
    %vm328 = vcmp.eq.f32.partialorder %v213, inf
    %v329 = vsel %vm328, %v213, %v327
    %vm330 = vcmp.eq.f32.partialorder %v213, 0.0
    %v331 = vand.u32 %v213, 2147483648
    %v332 = vsel %vm330, %v331, %v329
    %v333 = vand.u32 2147483647, %v95
    %v334 = vand.u32 2147483647, %v96
    %v335 = vand.u32 2147483647, %v97
    %v336 = vand.u32 2147483647, %v98
    %v337 = vand.u32 2147483647, %v99
    %v338 = vand.u32 2147483647, %v100
    %v339 = vand.u32 2147483647, %v101
    %v340 = vand.u32 2147483647, %v102
    %v341 = vand.u32 2147483647, %v103
    %v342 = vand.u32 2147483647, %v104
    %v343 = vand.u32 2147483647, %v105
    %v344 = vand.u32 2147483647, %v106
    %v345 = vand.u32 2147483647, %v107
    %v346 = vand.u32 2147483647, %v108
    %v347 = vand.u32 2147483647, %v109
    %v348 = vand.u32 2147483647, %v110
    %v349 = vand.u32 2147483647, %v111
    %v350 = vand.u32 2147483647, %v146
    %v351 = vand.u32 2147483647, %v147
    %v352 = vand.u32 2147483647, %v148
    %v353 = vand.u32 2147483647, %v149
    %v354 = vand.u32 2147483647, %v150
    %v355 = vand.u32 2147483647, %v151
    %v356 = vand.u32 2147483647, %v152
    %v357 = vand.u32 2147483647, %v153
    %v358 = vand.u32 2147483647, %v154
    %v359 = vand.u32 2147483647, %v155
    %v360 = vand.u32 2147483647, %v156
    %v361 = vand.u32 2147483647, %v157
    %v362 = vand.u32 2147483647, %v158
    %v363 = vand.u32 2147483647, %v159
    %v364 = vand.u32 2147483647, %v160
    %v365 = vand.u32 2147483647, %v161
    %v366 = vand.u32 2147483647, %v162
    %v367 = vmax.f32 %v333, %v350
    %v368 = vmax.f32 %v334, %v351
    %v369 = vmax.f32 %v335, %v352
    %v370 = vmax.f32 %v336, %v353
    %v371 = vmax.f32 %v337, %v354
    %v372 = vmax.f32 %v338, %v355
    %v373 = vmax.f32 %v339, %v356
    %v374 = vmax.f32 %v340, %v357
    %v375 = vmax.f32 %v341, %v358
    %v376 = vmax.f32 %v342, %v359
    %v377 = vmax.f32 %v343, %v360
    %v378 = vmax.f32 %v344, %v361
    %v379 = vmax.f32 %v345, %v362
    %v380 = vmax.f32 %v346, %v363
    %v381 = vmax.f32 %v347, %v364
    %v382 = vmax.f32 %v348, %v365
    %v383 = vmax.f32 %v349, %v366
    %v384 = vmin.f32 %v333, %v350
    %v385 = vmin.f32 %v334, %v351
    %v386 = vmin.f32 %v335, %v352
    %v387 = vmin.f32 %v336, %v353
    %v388 = vmin.f32 %v337, %v354
    %v389 = vmin.f32 %v338, %v355
    %v390 = vmin.f32 %v339, %v356
    %v391 = vmin.f32 %v340, %v357
    %v392 = vmin.f32 %v341, %v358
    %v393 = vmin.f32 %v342, %v359
    %v394 = vmin.f32 %v343, %v360
    %v395 = vmin.f32 %v344, %v361
    %v396 = vmin.f32 %v345, %v362
    %v397 = vmin.f32 %v346, %v363
    %v398 = vmin.f32 %v347, %v364
    %v399 = vmin.f32 %v348, %v365
    %v400 = vmin.f32 %v349, %v366
    %v401 = vrcp.pop %v367
    %v402 = vrcp.pop %v368
    %v403 = vrcp.pop %v369
    %v404 = vrcp.pop %v370
    %v405 = vrcp.pop %v371
    %v406 = vrcp.pop %v372
    %v407 = vrcp.pop %v373
    %v408 = vrcp.pop %v374
    %v409 = vrcp.pop %v375
    %v410 = vrcp.pop %v376
    %v411 = vrcp.pop %v377
    %v412 = vrcp.pop %v378
    %v413 = vrcp.pop %v379
    %v414 = vrcp.pop %v380
    %v415 = vrcp.pop %v381
    %v416 = vrcp.pop %v382
    %v417 = vrcp.pop %v383
    %v418 = vmul.f32 %v367, %v401
    %v419 = vmul.f32 %v368, %v402
    %v420 = vmul.f32 %v369, %v403
    %v421 = vmul.f32 %v370, %v404
    %v422 = vmul.f32 %v371, %v405
    %v423 = vmul.f32 %v372, %v406
    %v424 = vmul.f32 %v373, %v407
    %v425 = vmul.f32 %v374, %v408
    %v426 = vmul.f32 %v375, %v409
    %v427 = vmul.f32 %v376, %v410
    %v428 = vmul.f32 %v377, %v411
    %v429 = vmul.f32 %v378, %v412
    %v430 = vmul.f32 %v379, %v413
    %v431 = vmul.f32 %v380, %v414
    %v432 = vmul.f32 %v381, %v415
    %v433 = vmul.f32 %v382, %v416
    %v434 = vmul.f32 %v383, %v417
    %v435 = vsub.f32 2.0, %v418
    %v436 = vsub.f32 2.0, %v419
    %v437 = vsub.f32 2.0, %v420
    %v438 = vsub.f32 2.0, %v421
    %v439 = vsub.f32 2.0, %v422
    %v440 = vsub.f32 2.0, %v423
    %v441 = vsub.f32 2.0, %v424
    %v442 = vsub.f32 2.0, %v425
    %v443 = vsub.f32 2.0, %v426
    %v444 = vsub.f32 2.0, %v427
    %v445 = vsub.f32 2.0, %v428
    %v446 = vsub.f32 2.0, %v429
    %v447 = vsub.f32 2.0, %v430
    %v448 = vsub.f32 2.0, %v431
    %v449 = vsub.f32 2.0, %v432
    %v450 = vsub.f32 2.0, %v433
    %v451 = vsub.f32 2.0, %v434
    %v452 = vmul.f32 %v401, %v435
    %v453 = vmul.f32 %v402, %v436
    %v454 = vmul.f32 %v403, %v437
    %v455 = vmul.f32 %v404, %v438
    %v456 = vmul.f32 %v405, %v439
    %v457 = vmul.f32 %v406, %v440
    %v458 = vmul.f32 %v407, %v441
    %v459 = vmul.f32 %v408, %v442
    %v460 = vmul.f32 %v409, %v443
    %v461 = vmul.f32 %v410, %v444
    %v462 = vmul.f32 %v411, %v445
    %v463 = vmul.f32 %v412, %v446
    %v464 = vmul.f32 %v413, %v447
    %v465 = vmul.f32 %v414, %v448
    %v466 = vmul.f32 %v415, %v449
    %v467 = vmul.f32 %v416, %v450
    %v468 = vmul.f32 %v417, %v451
    %v469 = vmul.f32 %v384, %v452
    %v470 = vmul.f32 %v385, %v453
    %v471 = vmul.f32 %v386, %v454
    %v472 = vmul.f32 %v387, %v455
    %v473 = vmul.f32 %v388, %v456
    %v474 = vmul.f32 %v389, %v457
    %v475 = vmul.f32 %v390, %v458
    %v476 = vmul.f32 %v391, %v459
    %v477 = vmul.f32 %v392, %v460
    %v478 = vmul.f32 %v393, %v461
    %v479 = vmul.f32 %v394, %v462
    %v480 = vmul.f32 %v395, %v463
    %v481 = vmul.f32 %v396, %v464
    %v482 = vmul.f32 %v397, %v465
    %v483 = vmul.f32 %v398, %v466
    %v484 = vmul.f32 %v399, %v467
    %v485 = vmul.f32 %v400, %v468
    %v486 = vmul.f32 %v469, %v469
    %v487 = vmul.f32 %v470, %v470
    %v488 = vmul.f32 %v471, %v471
    %v489 = vmul.f32 %v472, %v472
    %v490 = vmul.f32 %v473, %v473
    %v491 = vmul.f32 %v474, %v474
    %v492 = vmul.f32 %v475, %v475
    %v493 = vmul.f32 %v476, %v476
    %v494 = vmul.f32 %v477, %v477
    %v495 = vmul.f32 %v478, %v478
    %v496 = vmul.f32 %v479, %v479
    %v497 = vmul.f32 %v480, %v480
    %v498 = vmul.f32 %v481, %v481
    %v499 = vmul.f32 %v482, %v482
    %v500 = vmul.f32 %v483, %v483
    %v501 = vmul.f32 %v484, %v484
    %v502 = vmul.f32 %v485, %v485
    %v503 = vmul.f32 %v486, -0.0117212
    %v504 = vmul.f32 %v487, -0.0117212
    %v505 = vmul.f32 %v488, -0.0117212
    %v506 = vmul.f32 %v489, -0.0117212
    %v507 = vmul.f32 %v490, -0.0117212
    %v508 = vmul.f32 %v491, -0.0117212
    %v509 = vmul.f32 %v492, -0.0117212
    %v510 = vmul.f32 %v493, -0.0117212
    %v511 = vmul.f32 %v494, -0.0117212
    %v512 = vmul.f32 %v495, -0.0117212
    %v513 = vmul.f32 %v496, -0.0117212
    %v514 = vmul.f32 %v497, -0.0117212
    %v515 = vmul.f32 %v498, -0.0117212
    %v516 = vmul.f32 %v499, -0.0117212
    %v517 = vmul.f32 %v500, -0.0117212
    %v518 = vmul.f32 %v501, -0.0117212
    %v519 = vmul.f32 %v502, -0.0117212
    %v520 = vadd.f32 %v503, 0.05265332
    %v521 = vadd.f32 %v504, 0.05265332
    %v522 = vadd.f32 %v505, 0.05265332
    %v523 = vadd.f32 %v506, 0.05265332
    %v524 = vadd.f32 %v507, 0.05265332
    %v525 = vadd.f32 %v508, 0.05265332
    %v526 = vadd.f32 %v509, 0.05265332
    %v527 = vadd.f32 %v510, 0.05265332
    %v528 = vadd.f32 %v511, 0.05265332
    %v529 = vadd.f32 %v512, 0.05265332
    %v530 = vadd.f32 %v513, 0.05265332
    %v531 = vadd.f32 %v514, 0.05265332
    %v532 = vadd.f32 %v515, 0.05265332
    %v533 = vadd.f32 %v516, 0.05265332
    %v534 = vadd.f32 %v517, 0.05265332
    %v535 = vadd.f32 %v518, 0.05265332
    %v536 = vadd.f32 %v519, 0.05265332
    %v537 = vmul.f32 %v520, %v486
    %v538 = vmul.f32 %v521, %v487
    %v539 = vmul.f32 %v522, %v488
    %v540 = vmul.f32 %v523, %v489
    %v541 = vmul.f32 %v524, %v490
    %v542 = vmul.f32 %v525, %v491
    %v543 = vmul.f32 %v526, %v492
    %v544 = vmul.f32 %v527, %v493
    %v545 = vmul.f32 %v528, %v494
    %v546 = vmul.f32 %v529, %v495
    %v547 = vmul.f32 %v530, %v496
    %v548 = vmul.f32 %v531, %v497
    %v549 = vmul.f32 %v532, %v498
    %v550 = vmul.f32 %v533, %v499
    %v551 = vmul.f32 %v534, %v500
    %v552 = vmul.f32 %v535, %v501
    %v553 = vmul.f32 %v536, %v502
    %v554 = vadd.f32 %v537, -0.11643287
    %v555 = vadd.f32 %v538, -0.11643287
    %v556 = vadd.f32 %v539, -0.11643287
    %v557 = vadd.f32 %v540, -0.11643287
    %v558 = vadd.f32 %v541, -0.11643287
    %v559 = vadd.f32 %v542, -0.11643287
    %v560 = vadd.f32 %v543, -0.11643287
    %v561 = vadd.f32 %v544, -0.11643287
    %v562 = vadd.f32 %v545, -0.11643287
    %v563 = vadd.f32 %v546, -0.11643287
    %v564 = vadd.f32 %v547, -0.11643287
    %v565 = vadd.f32 %v548, -0.11643287
    %v566 = vadd.f32 %v549, -0.11643287
    %v567 = vadd.f32 %v550, -0.11643287
    %v568 = vadd.f32 %v551, -0.11643287
    %v569 = vadd.f32 %v552, -0.11643287
    %v570 = vadd.f32 %v553, -0.11643287
    %v571 = vmul.f32 %v554, %v486
    %v572 = vmul.f32 %v555, %v487
    %v573 = vmul.f32 %v556, %v488
    %v574 = vmul.f32 %v557, %v489
    %v575 = vmul.f32 %v558, %v490
    %v576 = vmul.f32 %v559, %v491
    %v577 = vmul.f32 %v560, %v492
    %v578 = vmul.f32 %v561, %v493
    %v579 = vmul.f32 %v562, %v494
    %v580 = vmul.f32 %v563, %v495
    %v581 = vmul.f32 %v564, %v496
    %v582 = vmul.f32 %v565, %v497
    %v583 = vmul.f32 %v566, %v498
    %v584 = vmul.f32 %v567, %v499
    %v585 = vmul.f32 %v568, %v500
    %v586 = vmul.f32 %v569, %v501
    %v587 = vmul.f32 %v570, %v502
    %v588 = vadd.f32 %v571, 0.19354346
    %v589 = vadd.f32 %v572, 0.19354346
    %v590 = vadd.f32 %v573, 0.19354346
    %v591 = vadd.f32 %v574, 0.19354346
    %v592 = vadd.f32 %v575, 0.19354346
    %v593 = vadd.f32 %v576, 0.19354346
    %v594 = vadd.f32 %v577, 0.19354346
    %v595 = vadd.f32 %v578, 0.19354346
    %v596 = vadd.f32 %v579, 0.19354346
    %v597 = vadd.f32 %v580, 0.19354346
    %v598 = vadd.f32 %v581, 0.19354346
    %v599 = vadd.f32 %v582, 0.19354346
    %v600 = vadd.f32 %v583, 0.19354346
    %v601 = vadd.f32 %v584, 0.19354346
    %v602 = vadd.f32 %v585, 0.19354346
    %v603 = vadd.f32 %v586, 0.19354346
    %v604 = vadd.f32 %v587, 0.19354346
    %v605 = vmul.f32 %v588, %v486
    %v606 = vmul.f32 %v589, %v487
    %v607 = vmul.f32 %v590, %v488
    %v608 = vmul.f32 %v591, %v489
    %v609 = vmul.f32 %v592, %v490
    %v610 = vmul.f32 %v593, %v491
    %v611 = vmul.f32 %v594, %v492
    %v612 = vmul.f32 %v595, %v493
    %v613 = vmul.f32 %v596, %v494
    %v614 = vmul.f32 %v597, %v495
    %v615 = vmul.f32 %v598, %v496
    %v616 = vmul.f32 %v599, %v497
    %v617 = vmul.f32 %v600, %v498
    %v618 = vmul.f32 %v601, %v499
    %v619 = vmul.f32 %v602, %v500
    %v620 = vmul.f32 %v603, %v501
    %v621 = vmul.f32 %v604, %v502
    %v622 = vadd.f32 %v605, -0.33262348
    %v623 = vadd.f32 %v606, -0.33262348
    %v624 = vadd.f32 %v607, -0.33262348
    %v625 = vadd.f32 %v608, -0.33262348
    %v626 = vadd.f32 %v609, -0.33262348
    %v627 = vadd.f32 %v610, -0.33262348
    %v628 = vadd.f32 %v611, -0.33262348
    %v629 = vadd.f32 %v612, -0.33262348
    %v630 = vadd.f32 %v613, -0.33262348
    %v631 = vadd.f32 %v614, -0.33262348
    %v632 = vadd.f32 %v615, -0.33262348
    %v633 = vadd.f32 %v616, -0.33262348
    %v634 = vadd.f32 %v617, -0.33262348
    %v635 = vadd.f32 %v618, -0.33262348
    %v636 = vadd.f32 %v619, -0.33262348
    %v637 = vadd.f32 %v620, -0.33262348
    %v638 = vadd.f32 %v621, -0.33262348
    %v639 = vmul.f32 %v622, %v486
    %v640 = vmul.f32 %v623, %v487
    %v641 = vmul.f32 %v624, %v488
    %v642 = vmul.f32 %v625, %v489
    %v643 = vmul.f32 %v626, %v490
    %v644 = vmul.f32 %v627, %v491
    %v645 = vmul.f32 %v628, %v492
    %v646 = vmul.f32 %v629, %v493
    %v647 = vmul.f32 %v630, %v494
    %v648 = vmul.f32 %v631, %v495
    %v649 = vmul.f32 %v632, %v496
    %v650 = vmul.f32 %v633, %v497
    %v651 = vmul.f32 %v634, %v498
    %v652 = vmul.f32 %v635, %v499
    %v653 = vmul.f32 %v636, %v500
    %v654 = vmul.f32 %v637, %v501
    %v655 = vmul.f32 %v638, %v502
    %v656 = vadd.f32 %v639, 0.99997723
    %v657 = vadd.f32 %v640, 0.99997723
    %v658 = vadd.f32 %v641, 0.99997723
    %v659 = vadd.f32 %v642, 0.99997723
    %v660 = vadd.f32 %v643, 0.99997723
    %v661 = vadd.f32 %v644, 0.99997723
    %v662 = vadd.f32 %v645, 0.99997723
    %v663 = vadd.f32 %v646, 0.99997723
    %v664 = vadd.f32 %v647, 0.99997723
    %v665 = vadd.f32 %v648, 0.99997723
    %v666 = vadd.f32 %v649, 0.99997723
    %v667 = vadd.f32 %v650, 0.99997723
    %v668 = vadd.f32 %v651, 0.99997723
    %v669 = vadd.f32 %v652, 0.99997723
    %v670 = vadd.f32 %v653, 0.99997723
    %v671 = vadd.f32 %v654, 0.99997723
    %v672 = vadd.f32 %v655, 0.99997723
    %v673 = vmul.f32 %v469, %v656
    %v674 = vmul.f32 %v470, %v657
    %v675 = vmul.f32 %v471, %v658
    %v676 = vmul.f32 %v472, %v659
    %v677 = vmul.f32 %v473, %v660
    %v678 = vmul.f32 %v474, %v661
    %v679 = vmul.f32 %v475, %v662
    %v680 = vmul.f32 %v476, %v663
    %v681 = vmul.f32 %v477, %v664
    %v682 = vmul.f32 %v478, %v665
    %v683 = vmul.f32 %v479, %v666
    %v684 = vmul.f32 %v480, %v667
    %v685 = vmul.f32 %v481, %v668
    %v686 = vmul.f32 %v482, %v669
    %v687 = vmul.f32 %v483, %v670
    %v688 = vmul.f32 %v484, %v671
    %v689 = vmul.f32 %v485, %v672
    %v690 = vmul.f32 %v673, 57.29578
    %v691 = vmul.f32 %v674, 57.29578
    %v692 = vmul.f32 %v675, 57.29578
    %v693 = vmul.f32 %v676, 57.29578
    %v694 = vmul.f32 %v677, 57.29578
    %v695 = vmul.f32 %v678, 57.29578
    %v696 = vmul.f32 %v679, 57.29578
    %v697 = vmul.f32 %v680, 57.29578
    %v698 = vmul.f32 %v681, 57.29578
    %v699 = vmul.f32 %v682, 57.29578
    %v700 = vmul.f32 %v683, 57.29578
    %v701 = vmul.f32 %v684, 57.29578
    %v702 = vmul.f32 %v685, 57.29578
    %v703 = vmul.f32 %v686, 57.29578
    %v704 = vmul.f32 %v687, 57.29578
    %v705 = vmul.f32 %v688, 57.29578
    %v706 = vmul.f32 %v689, 57.29578
    %vm707 = vcmp.gt.f32.partialorder %v350, %v333
    %vm708 = vcmp.gt.f32.partialorder %v351, %v334
    %vm709 = vcmp.gt.f32.partialorder %v352, %v335
    %vm710 = vcmp.gt.f32.partialorder %v353, %v336
    %vm711 = vcmp.gt.f32.partialorder %v354, %v337
    %vm712 = vcmp.gt.f32.partialorder %v355, %v338
    %vm713 = vcmp.gt.f32.partialorder %v356, %v339
    %vm714 = vcmp.gt.f32.partialorder %v357, %v340
    %vm715 = vcmp.gt.f32.partialorder %v358, %v341
    %vm716 = vcmp.gt.f32.partialorder %v359, %v342
    %vm717 = vcmp.gt.f32.partialorder %v360, %v343
    %vm718 = vcmp.gt.f32.partialorder %v361, %v344
    %vm719 = vcmp.gt.f32.partialorder %v362, %v345
    %vm720 = vcmp.gt.f32.partialorder %v363, %v346
    %vm721 = vcmp.gt.f32.partialorder %v364, %v347
    %vm722 = vcmp.gt.f32.partialorder %v365, %v348
    %vm723 = vcmp.gt.f32.partialorder %v366, %v349
    %v724 = vsub.f32 90.0, %v690
    %v725 = vsub.f32 90.0, %v691
    %v726 = vsub.f32 90.0, %v692
    %v727 = vsub.f32 90.0, %v693
    %v728 = vsub.f32 90.0, %v694
    %v729 = vsub.f32 90.0, %v695
    %v730 = vsub.f32 90.0, %v696
    %v731 = vsub.f32 90.0, %v697
    %v732 = vsub.f32 90.0, %v698
    %v733 = vsub.f32 90.0, %v699
    %v734 = vsub.f32 90.0, %v700
    %v735 = vsub.f32 90.0, %v701
    %v736 = vsub.f32 90.0, %v702
    %v737 = vsub.f32 90.0, %v703
    %v738 = vsub.f32 90.0, %v704
    %v739 = vsub.f32 90.0, %v705
    %v740 = vsub.f32 90.0, %v706
    %v741 = vsel %vm707, %v724, %v690
    %v742 = vsel %vm708, %v725, %v691
    %v743 = vsel %vm709, %v726, %v692
    %v744 = vsel %vm710, %v727, %v693
    %v745 = vsel %vm711, %v728, %v694
    %v746 = vsel %vm712, %v729, %v695
    %v747 = vsel %vm713, %v730, %v696
    %v748 = vsel %vm714, %v731, %v697
    %v749 = vsel %vm715, %v732, %v698
    %v750 = vsel %vm716, %v733, %v699
    %v751 = vsel %vm717, %v734, %v700
    %v752 = vsel %vm718, %v735, %v701
    %v753 = vsel %vm719, %v736, %v702
    %v754 = vsel %vm720, %v737, %v703
    %v755 = vsel %vm721, %v738, %v704
    %v756 = vsel %vm722, %v739, %v705
    %v757 = vsel %vm723, %v740, %v706
    %v758 = vmul.f32 %v95, %v146
    %v759 = vmul.f32 %v96, %v147
    %v760 = vmul.f32 %v97, %v148
    %v761 = vmul.f32 %v98, %v149
    %v762 = vmul.f32 %v99, %v150
    %v763 = vmul.f32 %v100, %v151
    %v764 = vmul.f32 %v101, %v152
    %v765 = vmul.f32 %v102, %v153
    %v766 = vmul.f32 %v103, %v154
    %v767 = vmul.f32 %v104, %v155
    %v768 = vmul.f32 %v105, %v156
    %v769 = vmul.f32 %v106, %v157
    %v770 = vmul.f32 %v107, %v158
    %v771 = vmul.f32 %v108, %v159
    %v772 = vmul.f32 %v109, %v160
    %v773 = vmul.f32 %v110, %v161
    %v774 = vmul.f32 %v111, %v162
    %vm775 = vcmp.ge.f32.partialorder %v758, 0.0
    %vm776 = vcmp.ge.f32.partialorder %v759, 0.0
    %vm777 = vcmp.ge.f32.partialorder %v760, 0.0
    %vm778 = vcmp.ge.f32.partialorder %v761, 0.0
    %vm779 = vcmp.ge.f32.partialorder %v762, 0.0
    %vm780 = vcmp.ge.f32.partialorder %v763, 0.0
    %vm781 = vcmp.ge.f32.partialorder %v764, 0.0
    %vm782 = vcmp.ge.f32.partialorder %v765, 0.0
    %vm783 = vcmp.ge.f32.partialorder %v766, 0.0
    %vm784 = vcmp.ge.f32.partialorder %v767, 0.0
    %vm785 = vcmp.ge.f32.partialorder %v768, 0.0
    %vm786 = vcmp.ge.f32.partialorder %v769, 0.0
    %vm787 = vcmp.ge.f32.partialorder %v770, 0.0
    %vm788 = vcmp.ge.f32.partialorder %v771, 0.0
    %vm789 = vcmp.ge.f32.partialorder %v772, 0.0
    %vm790 = vcmp.ge.f32.partialorder %v773, 0.0
    %vm791 = vcmp.ge.f32.partialorder %v774, 0.0
    %v792 = vsub.f32 180.0, %v741
    %v793 = vsub.f32 180.0, %v742
    %v794 = vsub.f32 180.0, %v743
    %v795 = vsub.f32 180.0, %v744
    %v796 = vsub.f32 180.0, %v745
    %v797 = vsub.f32 180.0, %v746
    %v798 = vsub.f32 180.0, %v747
    %v799 = vsub.f32 180.0, %v748
    %v800 = vsub.f32 180.0, %v749
    %v801 = vsub.f32 180.0, %v750
    %v802 = vsub.f32 180.0, %v751
    %v803 = vsub.f32 180.0, %v752
    %v804 = vsub.f32 180.0, %v753
    %v805 = vsub.f32 180.0, %v754
    %v806 = vsub.f32 180.0, %v755
    %v807 = vsub.f32 180.0, %v756
    %v808 = vsub.f32 180.0, %v757
    %v809 = vsel %vm775, %v741, %v792
    %v810 = vsel %vm776, %v742, %v793
    %v811 = vsel %vm777, %v743, %v794
    %v812 = vsel %vm778, %v744, %v795
    %v813 = vsel %vm779, %v745, %v796
    %v814 = vsel %vm780, %v746, %v797
    %v815 = vsel %vm781, %v747, %v798
    %v816 = vsel %vm782, %v748, %v799
    %v817 = vsel %vm783, %v749, %v800
    %v818 = vsel %vm784, %v750, %v801
    %v819 = vsel %vm785, %v751, %v802
    %v820 = vsel %vm786, %v752, %v803
    %v821 = vsel %vm787, %v753, %v804
    %v822 = vsel %vm788, %v754, %v805
    %v823 = vsel %vm789, %v755, %v806
    %v824 = vsel %vm790, %v756, %v807
    %v825 = vsel %vm791, %v757, %v808
    %v826 = vfloor.f32 %v809
    %v827 = vfloor.f32 %v810
    %v828 = vfloor.f32 %v811
    %v829 = vfloor.f32 %v812
    %v830 = vfloor.f32 %v813
    %v831 = vfloor.f32 %v814
    %v832 = vfloor.f32 %v815
    %v833 = vfloor.f32 %v816
    %v834 = vfloor.f32 %v817
    %v835 = vfloor.f32 %v818
    %v836 = vfloor.f32 %v819
    %v837 = vfloor.f32 %v820
    %v838 = vfloor.f32 %v821
    %v839 = vfloor.f32 %v822
    %v840 = vfloor.f32 %v823
    %v841 = vfloor.f32 %v824
    %v842 = vfloor.f32 %v825
    %v843 = vadd.f32 %v826, 0.5
    %v844 = vadd.f32 %v827, 0.5
    %v845 = vadd.f32 %v828, 0.5
    %v846 = vadd.f32 %v829, 0.5
    %v847 = vadd.f32 %v830, 0.5
    %v848 = vadd.f32 %v831, 0.5
    %v849 = vadd.f32 %v832, 0.5
    %v850 = vadd.f32 %v833, 0.5
    %v851 = vadd.f32 %v834, 0.5
    %v852 = vadd.f32 %v835, 0.5
    %v853 = vadd.f32 %v836, 0.5
    %v854 = vadd.f32 %v837, 0.5
    %v855 = vadd.f32 %v838, 0.5
    %v856 = vadd.f32 %v839, 0.5
    %v857 = vadd.f32 %v840, 0.5
    %v858 = vadd.f32 %v841, 0.5
    %v859 = vadd.f32 %v842, 0.5
    %v860 = vmul.f32 %v843, 0.1
    %v861 = vmul.f32 %v844, 0.1
    %v862 = vmul.f32 %v845, 0.1
    %v863 = vmul.f32 %v846, 0.1
    %v864 = vmul.f32 %v847, 0.1
    %v865 = vmul.f32 %v848, 0.1
    %v866 = vmul.f32 %v849, 0.1
    %v867 = vmul.f32 %v850, 0.1
    %v868 = vmul.f32 %v851, 0.1
    %v869 = vmul.f32 %v852, 0.1
    %v870 = vmul.f32 %v853, 0.1
    %v871 = vmul.f32 %v854, 0.1
    %v872 = vmul.f32 %v855, 0.1
    %v873 = vmul.f32 %v856, 0.1
    %v874 = vmul.f32 %v857, 0.1
    %v875 = vmul.f32 %v858, 0.1
    %v876 = vmul.f32 %v859, 0.1
    %v877 = vfloor.f32 %v860
    %v878 = vfloor.f32 %v861
    %v879 = vfloor.f32 %v862
    %v880 = vfloor.f32 %v863
    %v881 = vfloor.f32 %v864
    %v882 = vfloor.f32 %v865
    %v883 = vfloor.f32 %v866
    %v884 = vfloor.f32 %v867
    %v885 = vfloor.f32 %v868
    %v886 = vfloor.f32 %v869
    %v887 = vfloor.f32 %v870
    %v888 = vfloor.f32 %v871
    %v889 = vfloor.f32 %v872
    %v890 = vfloor.f32 %v873
    %v891 = vfloor.f32 %v874
    %v892 = vfloor.f32 %v875
    %v893 = vfloor.f32 %v876
    %v894 = vmul.f32 %v877, 10.0
    %v895 = vmul.f32 %v878, 10.0
    %v896 = vmul.f32 %v879, 10.0
    %v897 = vmul.f32 %v880, 10.0
    %v898 = vmul.f32 %v881, 10.0
    %v899 = vmul.f32 %v882, 10.0
    %v900 = vmul.f32 %v883, 10.0
    %v901 = vmul.f32 %v884, 10.0
    %v902 = vmul.f32 %v885, 10.0
    %v903 = vmul.f32 %v886, 10.0
    %v904 = vmul.f32 %v887, 10.0
    %v905 = vmul.f32 %v888, 10.0
    %v906 = vmul.f32 %v889, 10.0
    %v907 = vmul.f32 %v890, 10.0
    %v908 = vmul.f32 %v891, 10.0
    %v909 = vmul.f32 %v892, 10.0
    %v910 = vmul.f32 %v893, 10.0
    %v911 = vsub.f32 %v826, %v894
    %v912 = vsub.f32 %v827, %v895
    %v913 = vsub.f32 %v828, %v896
    %v914 = vsub.f32 %v829, %v897
    %v915 = vsub.f32 %v830, %v898
    %v916 = vsub.f32 %v831, %v899
    %v917 = vsub.f32 %v832, %v900
    %v918 = vsub.f32 %v833, %v901
    %v919 = vsub.f32 %v834, %v902
    %v920 = vsub.f32 %v835, %v903
    %v921 = vsub.f32 %v836, %v904
    %v922 = vsub.f32 %v837, %v905
    %v923 = vsub.f32 %v838, %v906
    %v924 = vsub.f32 %v839, %v907
    %v925 = vsub.f32 %v840, %v908
    %v926 = vsub.f32 %v841, %v909
    %v927 = vsub.f32 %v842, %v910
    %v928 = vlaneseq
    %v929 = vshrl.u32 %v928, 7
    %v930 = vlaneseq
    %v931 = vand.u32 %v930, 127
    %v932 = vadd.s32 %v931, 128
    %v933 = vmul.u32 %v929, 17
    %vm934 = vcmp.ge.s32.totalorder %v931, %v933
    %vm935 = vcmp.ge.s32.totalorder %v932, %v933
    %v936 = vadd.s32 %v929, 1
    %v937 = vmul.u32 %v936, 17
    %vm938 = vcmp.lt.s32.totalorder %v931, %v937
    %vm939 = vcmp.lt.s32.totalorder %v932, %v937
    %vm940 = vmand %vm934, %vm938
    %vm941 = vmand %vm935, %vm939
    %v942 = vsel %vm940, 1, 0
    %v943 = vsel %vm941, 1, 0
    %v944 = vcvt.s32.f32 %v942
    %v945 = vcvt.s32.f32 %v943
    %vm946 = vcmp.eq.f32.partialorder %v911, 0.0
    %vm947 = vcmp.eq.f32.partialorder %v912, 0.0
    %vm948 = vcmp.eq.f32.partialorder %v913, 0.0
    %vm949 = vcmp.eq.f32.partialorder %v914, 0.0
    %vm950 = vcmp.eq.f32.partialorder %v915, 0.0
    %vm951 = vcmp.eq.f32.partialorder %v916, 0.0
    %vm952 = vcmp.eq.f32.partialorder %v917, 0.0
    %vm953 = vcmp.eq.f32.partialorder %v918, 0.0
    %vm954 = vcmp.eq.f32.partialorder %v919, 0.0
    %vm955 = vcmp.eq.f32.partialorder %v920, 0.0
    %vm956 = vcmp.eq.f32.partialorder %v921, 0.0
    %vm957 = vcmp.eq.f32.partialorder %v922, 0.0
    %vm958 = vcmp.eq.f32.partialorder %v923, 0.0
    %vm959 = vcmp.eq.f32.partialorder %v924, 0.0
    %vm960 = vcmp.eq.f32.partialorder %v925, 0.0
    %vm961 = vcmp.eq.f32.partialorder %v926, 0.0
    %vm962 = vcmp.eq.f32.partialorder %v927, 0.0
    %v963 = vsel %vm946, %v220, 0.0
    %v964 = vsel %vm947, %v227, 0.0
    %v965 = vsel %vm948, %v234, 0.0
    %v966 = vsel %vm949, %v241, 0.0
    %v967 = vsel %vm950, %v248, 0.0
    %v968 = vsel %vm951, %v255, 0.0
    %v969 = vsel %vm952, %v262, 0.0
    %v970 = vsel %vm953, %v269, 0.0
    %v971 = vsel %vm954, %v276, 0.0
    %v972 = vsel %vm955, %v283, 0.0
    %v973 = vsel %vm956, %v290, 0.0
    %v974 = vsel %vm957, %v297, 0.0
    %v975 = vsel %vm958, %v304, 0.0
    %v976 = vsel %vm959, %v311, 0.0
    %v977 = vsel %vm960, %v318, 0.0
    %v978 = vsel %vm961, %v325, 0.0
    %v979 = vsel %vm962, %v332, 0.0
    %vm980 = vcmask 64512
    %v982 = vsel %vm980, %v945, 0
    %984 = vmatprep.subr.mxu0 0.0
    %985 = vmatpush1.msra.mxu0 %v978
    %986 = vmatprep.subr.mxu0 0.0
    %987 = vmatpush1.msra.mxu0 %v977
    %988 = vmatprep.subr.mxu0 0.0
    %989 = vmatpush1.msra.mxu0 %v976
    %990 = vmatprep.subr.mxu0 0.0
    %991 = vmatpush1.msra.mxu0 %v975
    %992 = vmatprep.subr.mxu0 0.0
    %993 = vmatpush1.msra.mxu0 %v974
    %994 = vmatprep.subr.mxu0 0.0
    %995 = vmatpush1.msra.mxu0 %v973
    %996 = vmatprep.subr.mxu0 0.0
    %997 = vmatpush1.msra.mxu0 %v972
    %998 = vmatprep.subr.mxu0 0.0
    %999 = vmatpush1.msra.mxu0 %v971
    %1000 = vmatprep.subr.mxu0 0.0
    %1001 = vmatpush1.msra.mxu0 %v970
    %1002 = vmatprep.subr.mxu0 0.0
    %1003 = vmatpush1.msra.mxu0 %v969
    %1004 = vmatprep.subr.mxu0 0.0
    %1005 = vmatpush1.msra.mxu0 %v968
    %1006 = vmatprep.subr.mxu0 0.0
    %1007 = vmatpush1.msra.mxu0 %v967
    %1008 = vmatprep.subr.mxu0 0.0
    %1009 = vmatpush1.msra.mxu0 %v966
    %1010 = vmatprep.subr.mxu0 0.0
    %1011 = vmatpush1.msra.mxu0 %v965
    %1012 = vmatprep.subr.mxu0 0.0
    %1013 = vmatpush1.msra.mxu0 %v964
    %1014 = vmatprep.subr.mxu0 0.0
    %1015 = vmatpush1.msra.mxu0 %v963
    %1016 = vmatprep.subr.mxu0 0.0
    %1017 = vmatpush2.msra.mxu0 0.0
    %1018 = vmatprep.subr.mxu0 0.0
    %1019 = vmatpush2.msra.mxu0 0.0
    %1020 = vmatprep.subr.mxu0 0.0
    %1021 = vmatpush2.msra.mxu0 0.0
    %1022 = vmatprep.subr.mxu0 0.0
    %1023 = vmatpush2.msra.mxu0 0.0
    %1024 = vmatprep.subr.mxu0 0.0
    %1025 = vmatpush2.msra.mxu0 0.0
    %1026 = vmatprep.subr.mxu0 0.0
    %1027 = vmatpush2.msra.mxu0 0.0
    %1028 = vmatprep.subr.mxu0 0.0
    %1029 = vmatpush2.msra.mxu0 0.0
    %1030 = vmatprep.subr.mxu0 0.0
    %1031 = vmatpush2.msra.mxu0 0.0
    %1032 = vmatprep.subr.mxu0 0.0
    %1033 = vmatpush2.msra.mxu0 0.0
    %1034 = vmatprep.subr.mxu0 0.0
    %1035 = vmatpush2.msra.mxu0 0.0
    %1036 = vmatprep.subr.mxu0 0.0
    %1037 = vmatpush2.msra.mxu0 0.0
    %1038 = vmatprep.subr.mxu0 0.0
    %1039 = vmatpush2.msra.mxu0 0.0
    %1040 = vmatprep.subr.mxu0 0.0
    %1041 = vmatpush2.msra.mxu0 0.0
    %1042 = vmatprep.subr.mxu0 0.0
    %1043 = vmatpush2.msra.mxu0 0.0
    %1044 = vmatprep.subr.mxu0 0.0
    %1045 = vmatpush2.msra.mxu0 0.0
    %1046 = vmatprep.subr.mxu0 0.0
    %1047 = vmatpush2.msra.mxu0 %v979
    %1048 = vmatprep.mubr.f32.mxu0 %v982
    %1049 = vmatmul.mubr.f32.gmra.mxu0 %v944
    %v1050 = vpop.f32.mrf.mxu0
    %v1051 = vadd.f32 0.0, %v1050
    %v1052 = vpop.f32.mrf.mxu0
    %1053 = vdwg.mxu0
    %1054 = vrot.lane.b32.xlu0 %v1051, 127
    %v1055 = vpop.permute.xlu0 %1054
    %v1056 = vsub.f32 %v1055, %v1051
    %v1057 = vmax.f32 %v1056, 0.0
    %v1058 = vadd.f32 %v1057, 0.0
    %vm1059 = vcmp.eq.f32.partialorder %v911, 1.0
    %vm1060 = vcmp.eq.f32.partialorder %v912, 1.0
    %vm1061 = vcmp.eq.f32.partialorder %v913, 1.0
    %vm1062 = vcmp.eq.f32.partialorder %v914, 1.0
    %vm1063 = vcmp.eq.f32.partialorder %v915, 1.0
    %vm1064 = vcmp.eq.f32.partialorder %v916, 1.0
    %vm1065 = vcmp.eq.f32.partialorder %v917, 1.0
    %vm1066 = vcmp.eq.f32.partialorder %v918, 1.0
    %vm1067 = vcmp.eq.f32.partialorder %v919, 1.0
    %vm1068 = vcmp.eq.f32.partialorder %v920, 1.0
    %vm1069 = vcmp.eq.f32.partialorder %v921, 1.0
    %vm1070 = vcmp.eq.f32.partialorder %v922, 1.0
    %vm1071 = vcmp.eq.f32.partialorder %v923, 1.0
    %vm1072 = vcmp.eq.f32.partialorder %v924, 1.0
    %vm1073 = vcmp.eq.f32.partialorder %v925, 1.0
    %vm1074 = vcmp.eq.f32.partialorder %v926, 1.0
    %vm1075 = vcmp.eq.f32.partialorder %v927, 1.0
    %v1076 = vsel %vm1059, %v220, 0.0
    %v1077 = vsel %vm1060, %v227, 0.0
    %v1078 = vsel %vm1061, %v234, 0.0
    %v1079 = vsel %vm1062, %v241, 0.0
    %v1080 = vsel %vm1063, %v248, 0.0
    %v1081 = vsel %vm1064, %v255, 0.0
    %v1082 = vsel %vm1065, %v262, 0.0
    %v1083 = vsel %vm1066, %v269, 0.0
    %v1084 = vsel %vm1067, %v276, 0.0
    %v1085 = vsel %vm1068, %v283, 0.0
    %v1086 = vsel %vm1069, %v290, 0.0
    %v1087 = vsel %vm1070, %v297, 0.0
    %v1088 = vsel %vm1071, %v304, 0.0
    %v1089 = vsel %vm1072, %v311, 0.0
    %v1090 = vsel %vm1073, %v318, 0.0
    %v1091 = vsel %vm1074, %v325, 0.0
    %v1092 = vsel %vm1075, %v332, 0.0
    %1093 = vmatprep.subr.mxu0 0.0
    %1094 = vmatpush1.msra.mxu0 %v1091
    %1095 = vmatprep.subr.mxu0 0.0
    %1096 = vmatpush1.msra.mxu0 %v1090
    %1097 = vmatprep.subr.mxu0 0.0
    %1098 = vmatpush1.msra.mxu0 %v1089
    %1099 = vmatprep.subr.mxu0 0.0
    %1100 = vmatpush1.msra.mxu0 %v1088
    %1101 = vmatprep.subr.mxu0 0.0
    %1102 = vmatpush1.msra.mxu0 %v1087
    %1103 = vmatprep.subr.mxu0 0.0
    %1104 = vmatpush1.msra.mxu0 %v1086
    %1105 = vmatprep.subr.mxu0 0.0
    %1106 = vmatpush1.msra.mxu0 %v1085
    %1107 = vmatprep.subr.mxu0 0.0
    %1108 = vmatpush1.msra.mxu0 %v1084
    %1109 = vmatprep.subr.mxu0 0.0
    %1110 = vmatpush1.msra.mxu0 %v1083
    %1111 = vmatprep.subr.mxu0 0.0
    %1112 = vmatpush1.msra.mxu0 %v1082
    %1113 = vmatprep.subr.mxu0 0.0
    %1114 = vmatpush1.msra.mxu0 %v1081
    %1115 = vmatprep.subr.mxu0 0.0
    %1116 = vmatpush1.msra.mxu0 %v1080
    %1117 = vmatprep.subr.mxu0 0.0
    %1118 = vmatpush1.msra.mxu0 %v1079
    %1119 = vmatprep.subr.mxu0 0.0
    %1120 = vmatpush1.msra.mxu0 %v1078
    %1121 = vmatprep.subr.mxu0 0.0
    %1122 = vmatpush1.msra.mxu0 %v1077
    %1123 = vmatprep.subr.mxu0 0.0
    %1124 = vmatpush1.msra.mxu0 %v1076
    %1125 = vmatprep.subr.mxu0 0.0
    %1126 = vmatpush2.msra.mxu0 0.0
    %1127 = vmatprep.subr.mxu0 0.0
    %1128 = vmatpush2.msra.mxu0 0.0
    %1129 = vmatprep.subr.mxu0 0.0
    %1130 = vmatpush2.msra.mxu0 0.0
    %1131 = vmatprep.subr.mxu0 0.0
    %1132 = vmatpush2.msra.mxu0 0.0
    %1133 = vmatprep.subr.mxu0 0.0
    %1134 = vmatpush2.msra.mxu0 0.0
    %1135 = vmatprep.subr.mxu0 0.0
    %1136 = vmatpush2.msra.mxu0 0.0
    %1137 = vmatprep.subr.mxu0 0.0
    %1138 = vmatpush2.msra.mxu0 0.0
    %1139 = vmatprep.subr.mxu0 0.0
    %1140 = vmatpush2.msra.mxu0 0.0
    %1141 = vmatprep.subr.mxu0 0.0
    %1142 = vmatpush2.msra.mxu0 0.0
    %1143 = vmatprep.subr.mxu0 0.0
    %1144 = vmatpush2.msra.mxu0 0.0
    %1145 = vmatprep.subr.mxu0 0.0
    %1146 = vmatpush2.msra.mxu0 0.0
    %1147 = vmatprep.subr.mxu0 0.0
    %1148 = vmatpush2.msra.mxu0 0.0
    %1149 = vmatprep.subr.mxu0 0.0
    %1150 = vmatpush2.msra.mxu0 0.0
    %1151 = vmatprep.subr.mxu0 0.0
    %1152 = vmatpush2.msra.mxu0 0.0
    %1153 = vmatprep.subr.mxu0 0.0
    %1154 = vmatpush2.msra.mxu0 0.0
    %1155 = vmatprep.subr.mxu0 0.0
    %1156 = vmatpush2.msra.mxu0 %v1092
    %1157 = vmatprep.mubr.f32.mxu0 %v982
    %1158 = vmatmul.mubr.f32.gmra.mxu0 %v944
    %v1159 = vpop.f32.mrf.mxu0
    %v1160 = vadd.f32 0.0, %v1159
    %v1161 = vpop.f32.mrf.mxu0
    %1162 = vdwg.mxu0
    %1163 = vrot.lane.b32.xlu0 %v1160, 127
    %v1164 = vpop.permute.xlu0 %1163
    %v1165 = vsub.f32 %v1164, %v1160
    %v1166 = vmax.f32 %v1165, 0.0
    %v1167 = vadd.f32 %v1058, %v1166
    %vm1168 = vcmp.eq.f32.partialorder %v911, 2.0
    %vm1169 = vcmp.eq.f32.partialorder %v912, 2.0
    %vm1170 = vcmp.eq.f32.partialorder %v913, 2.0
    %vm1171 = vcmp.eq.f32.partialorder %v914, 2.0
    %vm1172 = vcmp.eq.f32.partialorder %v915, 2.0
    %vm1173 = vcmp.eq.f32.partialorder %v916, 2.0
    %vm1174 = vcmp.eq.f32.partialorder %v917, 2.0
    %vm1175 = vcmp.eq.f32.partialorder %v918, 2.0
    %vm1176 = vcmp.eq.f32.partialorder %v919, 2.0
    %vm1177 = vcmp.eq.f32.partialorder %v920, 2.0
    %vm1178 = vcmp.eq.f32.partialorder %v921, 2.0
    %vm1179 = vcmp.eq.f32.partialorder %v922, 2.0
    %vm1180 = vcmp.eq.f32.partialorder %v923, 2.0
    %vm1181 = vcmp.eq.f32.partialorder %v924, 2.0
    %vm1182 = vcmp.eq.f32.partialorder %v925, 2.0
    %vm1183 = vcmp.eq.f32.partialorder %v926, 2.0
    %vm1184 = vcmp.eq.f32.partialorder %v927, 2.0
    %v1185 = vsel %vm1168, %v220, 0.0
    %v1186 = vsel %vm1169, %v227, 0.0
    %v1187 = vsel %vm1170, %v234, 0.0
    %v1188 = vsel %vm1171, %v241, 0.0
    %v1189 = vsel %vm1172, %v248, 0.0
    %v1190 = vsel %vm1173, %v255, 0.0
    %v1191 = vsel %vm1174, %v262, 0.0
    %v1192 = vsel %vm1175, %v269, 0.0
    %v1193 = vsel %vm1176, %v276, 0.0
    %v1194 = vsel %vm1177, %v283, 0.0
    %v1195 = vsel %vm1178, %v290, 0.0
    %v1196 = vsel %vm1179, %v297, 0.0
    %v1197 = vsel %vm1180, %v304, 0.0
    %v1198 = vsel %vm1181, %v311, 0.0
    %v1199 = vsel %vm1182, %v318, 0.0
    %v1200 = vsel %vm1183, %v325, 0.0
    %v1201 = vsel %vm1184, %v332, 0.0
    %1202 = vmatprep.subr.mxu0 0.0
    %1203 = vmatpush1.msra.mxu0 %v1200
    %1204 = vmatprep.subr.mxu0 0.0
    %1205 = vmatpush1.msra.mxu0 %v1199
    %1206 = vmatprep.subr.mxu0 0.0
    %1207 = vmatpush1.msra.mxu0 %v1198
    %1208 = vmatprep.subr.mxu0 0.0
    %1209 = vmatpush1.msra.mxu0 %v1197
    %1210 = vmatprep.subr.mxu0 0.0
    %1211 = vmatpush1.msra.mxu0 %v1196
    %1212 = vmatprep.subr.mxu0 0.0
    %1213 = vmatpush1.msra.mxu0 %v1195
    %1214 = vmatprep.subr.mxu0 0.0
    %1215 = vmatpush1.msra.mxu0 %v1194
    %1216 = vmatprep.subr.mxu0 0.0
    %1217 = vmatpush1.msra.mxu0 %v1193
    %1218 = vmatprep.subr.mxu0 0.0
    %1219 = vmatpush1.msra.mxu0 %v1192
    %1220 = vmatprep.subr.mxu0 0.0
    %1221 = vmatpush1.msra.mxu0 %v1191
    %1222 = vmatprep.subr.mxu0 0.0
    %1223 = vmatpush1.msra.mxu0 %v1190
    %1224 = vmatprep.subr.mxu0 0.0
    %1225 = vmatpush1.msra.mxu0 %v1189
    %1226 = vmatprep.subr.mxu0 0.0
    %1227 = vmatpush1.msra.mxu0 %v1188
    %1228 = vmatprep.subr.mxu0 0.0
    %1229 = vmatpush1.msra.mxu0 %v1187
    %1230 = vmatprep.subr.mxu0 0.0
    %1231 = vmatpush1.msra.mxu0 %v1186
    %1232 = vmatprep.subr.mxu0 0.0
    %1233 = vmatpush1.msra.mxu0 %v1185
    %1234 = vmatprep.subr.mxu0 0.0
    %1235 = vmatpush2.msra.mxu0 0.0
    %1236 = vmatprep.subr.mxu0 0.0
    %1237 = vmatpush2.msra.mxu0 0.0
    %1238 = vmatprep.subr.mxu0 0.0
    %1239 = vmatpush2.msra.mxu0 0.0
    %1240 = vmatprep.subr.mxu0 0.0
    %1241 = vmatpush2.msra.mxu0 0.0
    %1242 = vmatprep.subr.mxu0 0.0
    %1243 = vmatpush2.msra.mxu0 0.0
    %1244 = vmatprep.subr.mxu0 0.0
    %1245 = vmatpush2.msra.mxu0 0.0
    %1246 = vmatprep.subr.mxu0 0.0
    %1247 = vmatpush2.msra.mxu0 0.0
    %1248 = vmatprep.subr.mxu0 0.0
    %1249 = vmatpush2.msra.mxu0 0.0
    %1250 = vmatprep.subr.mxu0 0.0
    %1251 = vmatpush2.msra.mxu0 0.0
    %1252 = vmatprep.subr.mxu0 0.0
    %1253 = vmatpush2.msra.mxu0 0.0
    %1254 = vmatprep.subr.mxu0 0.0
    %1255 = vmatpush2.msra.mxu0 0.0
    %1256 = vmatprep.subr.mxu0 0.0
    %1257 = vmatpush2.msra.mxu0 0.0
    %1258 = vmatprep.subr.mxu0 0.0
    %1259 = vmatpush2.msra.mxu0 0.0
    %1260 = vmatprep.subr.mxu0 0.0
    %1261 = vmatpush2.msra.mxu0 0.0
    %1262 = vmatprep.subr.mxu0 0.0
    %1263 = vmatpush2.msra.mxu0 0.0
    %1264 = vmatprep.subr.mxu0 0.0
    %1265 = vmatpush2.msra.mxu0 %v1201
    %1266 = vmatprep.mubr.f32.mxu0 %v982
    %1267 = vmatmul.mubr.f32.gmra.mxu0 %v944
    %v1268 = vpop.f32.mrf.mxu0
    %v1269 = vadd.f32 0.0, %v1268
    %v1270 = vpop.f32.mrf.mxu0
    %1271 = vdwg.mxu0
    %1272 = vrot.lane.b32.xlu0 %v1269, 127
    %v1273 = vpop.permute.xlu0 %1272
    %v1274 = vsub.f32 %v1273, %v1269
    %v1275 = vmax.f32 %v1274, 0.0
    %v1276 = vadd.f32 %v1167, %v1275
    %vm1277 = vcmp.eq.f32.partialorder %v911, 3.0
    %vm1278 = vcmp.eq.f32.partialorder %v912, 3.0
    %vm1279 = vcmp.eq.f32.partialorder %v913, 3.0
    %vm1280 = vcmp.eq.f32.partialorder %v914, 3.0
    %vm1281 = vcmp.eq.f32.partialorder %v915, 3.0
    %vm1282 = vcmp.eq.f32.partialorder %v916, 3.0
    %vm1283 = vcmp.eq.f32.partialorder %v917, 3.0
    %vm1284 = vcmp.eq.f32.partialorder %v918, 3.0
    %vm1285 = vcmp.eq.f32.partialorder %v919, 3.0
    %vm1286 = vcmp.eq.f32.partialorder %v920, 3.0
    %vm1287 = vcmp.eq.f32.partialorder %v921, 3.0
    %vm1288 = vcmp.eq.f32.partialorder %v922, 3.0
    %vm1289 = vcmp.eq.f32.partialorder %v923, 3.0
    %vm1290 = vcmp.eq.f32.partialorder %v924, 3.0
    %vm1291 = vcmp.eq.f32.partialorder %v925, 3.0
    %vm1292 = vcmp.eq.f32.partialorder %v926, 3.0
    %vm1293 = vcmp.eq.f32.partialorder %v927, 3.0
    %v1294 = vsel %vm1277, %v220, 0.0
    %v1295 = vsel %vm1278, %v227, 0.0
    %v1296 = vsel %vm1279, %v234, 0.0
    %v1297 = vsel %vm1280, %v241, 0.0
    %v1298 = vsel %vm1281, %v248, 0.0
    %v1299 = vsel %vm1282, %v255, 0.0
    %v1300 = vsel %vm1283, %v262, 0.0
    %v1301 = vsel %vm1284, %v269, 0.0
    %v1302 = vsel %vm1285, %v276, 0.0
    %v1303 = vsel %vm1286, %v283, 0.0
    %v1304 = vsel %vm1287, %v290, 0.0
    %v1305 = vsel %vm1288, %v297, 0.0
    %v1306 = vsel %vm1289, %v304, 0.0
    %v1307 = vsel %vm1290, %v311, 0.0
    %v1308 = vsel %vm1291, %v318, 0.0
    %v1309 = vsel %vm1292, %v325, 0.0
    %v1310 = vsel %vm1293, %v332, 0.0
    %1311 = vmatprep.subr.mxu0 0.0
    %1312 = vmatpush1.msra.mxu0 %v1309
    %1313 = vmatprep.subr.mxu0 0.0
    %1314 = vmatpush1.msra.mxu0 %v1308
    %1315 = vmatprep.subr.mxu0 0.0
    %1316 = vmatpush1.msra.mxu0 %v1307
    %1317 = vmatprep.subr.mxu0 0.0
    %1318 = vmatpush1.msra.mxu0 %v1306
    %1319 = vmatprep.subr.mxu0 0.0
    %1320 = vmatpush1.msra.mxu0 %v1305
    %1321 = vmatprep.subr.mxu0 0.0
    %1322 = vmatpush1.msra.mxu0 %v1304
    %1323 = vmatprep.subr.mxu0 0.0
    %1324 = vmatpush1.msra.mxu0 %v1303
    %1325 = vmatprep.subr.mxu0 0.0
    %1326 = vmatpush1.msra.mxu0 %v1302
    %1327 = vmatprep.subr.mxu0 0.0
    %1328 = vmatpush1.msra.mxu0 %v1301
    %1329 = vmatprep.subr.mxu0 0.0
    %1330 = vmatpush1.msra.mxu0 %v1300
    %1331 = vmatprep.subr.mxu0 0.0
    %1332 = vmatpush1.msra.mxu0 %v1299
    %1333 = vmatprep.subr.mxu0 0.0
    %1334 = vmatpush1.msra.mxu0 %v1298
    %1335 = vmatprep.subr.mxu0 0.0
    %1336 = vmatpush1.msra.mxu0 %v1297
    %1337 = vmatprep.subr.mxu0 0.0
    %1338 = vmatpush1.msra.mxu0 %v1296
    %1339 = vmatprep.subr.mxu0 0.0
    %1340 = vmatpush1.msra.mxu0 %v1295
    %1341 = vmatprep.subr.mxu0 0.0
    %1342 = vmatpush1.msra.mxu0 %v1294
    %1343 = vmatprep.subr.mxu0 0.0
    %1344 = vmatpush2.msra.mxu0 0.0
    %1345 = vmatprep.subr.mxu0 0.0
    %1346 = vmatpush2.msra.mxu0 0.0
    %1347 = vmatprep.subr.mxu0 0.0
    %1348 = vmatpush2.msra.mxu0 0.0
    %1349 = vmatprep.subr.mxu0 0.0
    %1350 = vmatpush2.msra.mxu0 0.0
    %1351 = vmatprep.subr.mxu0 0.0
    %1352 = vmatpush2.msra.mxu0 0.0
    %1353 = vmatprep.subr.mxu0 0.0
    %1354 = vmatpush2.msra.mxu0 0.0
    %1355 = vmatprep.subr.mxu0 0.0
    %1356 = vmatpush2.msra.mxu0 0.0
    %1357 = vmatprep.subr.mxu0 0.0
    %1358 = vmatpush2.msra.mxu0 0.0
    %1359 = vmatprep.subr.mxu0 0.0
    %1360 = vmatpush2.msra.mxu0 0.0
    %1361 = vmatprep.subr.mxu0 0.0
    %1362 = vmatpush2.msra.mxu0 0.0
    %1363 = vmatprep.subr.mxu0 0.0
    %1364 = vmatpush2.msra.mxu0 0.0
    %1365 = vmatprep.subr.mxu0 0.0
    %1366 = vmatpush2.msra.mxu0 0.0
    %1367 = vmatprep.subr.mxu0 0.0
    %1368 = vmatpush2.msra.mxu0 0.0
    %1369 = vmatprep.subr.mxu0 0.0
    %1370 = vmatpush2.msra.mxu0 0.0
    %1371 = vmatprep.subr.mxu0 0.0
    %1372 = vmatpush2.msra.mxu0 0.0
    %1373 = vmatprep.subr.mxu0 0.0
    %1374 = vmatpush2.msra.mxu0 %v1310
    %1375 = vmatprep.mubr.f32.mxu0 %v982
    %1376 = vmatmul.mubr.f32.gmra.mxu0 %v944
    %v1377 = vpop.f32.mrf.mxu0
    %v1378 = vadd.f32 0.0, %v1377
    %v1379 = vpop.f32.mrf.mxu0
    %1380 = vdwg.mxu0
    %1381 = vrot.lane.b32.xlu0 %v1378, 127
    %v1382 = vpop.permute.xlu0 %1381
    %v1383 = vsub.f32 %v1382, %v1378
    %v1384 = vmax.f32 %v1383, 0.0
    %v1385 = vadd.f32 %v1276, %v1384
    %vm1386 = vcmp.eq.f32.partialorder %v911, 4.0
    %vm1387 = vcmp.eq.f32.partialorder %v912, 4.0
    %vm1388 = vcmp.eq.f32.partialorder %v913, 4.0
    %vm1389 = vcmp.eq.f32.partialorder %v914, 4.0
    %vm1390 = vcmp.eq.f32.partialorder %v915, 4.0
    %vm1391 = vcmp.eq.f32.partialorder %v916, 4.0
    %vm1392 = vcmp.eq.f32.partialorder %v917, 4.0
    %vm1393 = vcmp.eq.f32.partialorder %v918, 4.0
    %vm1394 = vcmp.eq.f32.partialorder %v919, 4.0
    %vm1395 = vcmp.eq.f32.partialorder %v920, 4.0
    %vm1396 = vcmp.eq.f32.partialorder %v921, 4.0
    %vm1397 = vcmp.eq.f32.partialorder %v922, 4.0
    %vm1398 = vcmp.eq.f32.partialorder %v923, 4.0
    %vm1399 = vcmp.eq.f32.partialorder %v924, 4.0
    %vm1400 = vcmp.eq.f32.partialorder %v925, 4.0
    %vm1401 = vcmp.eq.f32.partialorder %v926, 4.0
    %vm1402 = vcmp.eq.f32.partialorder %v927, 4.0
    %v1403 = vsel %vm1386, %v220, 0.0
    %v1404 = vsel %vm1387, %v227, 0.0
    %v1405 = vsel %vm1388, %v234, 0.0
    %v1406 = vsel %vm1389, %v241, 0.0
    %v1407 = vsel %vm1390, %v248, 0.0
    %v1408 = vsel %vm1391, %v255, 0.0
    %v1409 = vsel %vm1392, %v262, 0.0
    %v1410 = vsel %vm1393, %v269, 0.0
    %v1411 = vsel %vm1394, %v276, 0.0
    %v1412 = vsel %vm1395, %v283, 0.0
    %v1413 = vsel %vm1396, %v290, 0.0
    %v1414 = vsel %vm1397, %v297, 0.0
    %v1415 = vsel %vm1398, %v304, 0.0
    %v1416 = vsel %vm1399, %v311, 0.0
    %v1417 = vsel %vm1400, %v318, 0.0
    %v1418 = vsel %vm1401, %v325, 0.0
    %v1419 = vsel %vm1402, %v332, 0.0
    %1420 = vmatprep.subr.mxu0 0.0
    %1421 = vmatpush1.msra.mxu0 %v1418
    %1422 = vmatprep.subr.mxu0 0.0
    %1423 = vmatpush1.msra.mxu0 %v1417
    %1424 = vmatprep.subr.mxu0 0.0
    %1425 = vmatpush1.msra.mxu0 %v1416
    %1426 = vmatprep.subr.mxu0 0.0
    %1427 = vmatpush1.msra.mxu0 %v1415
    %1428 = vmatprep.subr.mxu0 0.0
    %1429 = vmatpush1.msra.mxu0 %v1414
    %1430 = vmatprep.subr.mxu0 0.0
    %1431 = vmatpush1.msra.mxu0 %v1413
    %1432 = vmatprep.subr.mxu0 0.0
    %1433 = vmatpush1.msra.mxu0 %v1412
    %1434 = vmatprep.subr.mxu0 0.0
    %1435 = vmatpush1.msra.mxu0 %v1411
    %1436 = vmatprep.subr.mxu0 0.0
    %1437 = vmatpush1.msra.mxu0 %v1410
    %1438 = vmatprep.subr.mxu0 0.0
    %1439 = vmatpush1.msra.mxu0 %v1409
    %1440 = vmatprep.subr.mxu0 0.0
    %1441 = vmatpush1.msra.mxu0 %v1408
    %1442 = vmatprep.subr.mxu0 0.0
    %1443 = vmatpush1.msra.mxu0 %v1407
    %1444 = vmatprep.subr.mxu0 0.0
    %1445 = vmatpush1.msra.mxu0 %v1406
    %1446 = vmatprep.subr.mxu0 0.0
    %1447 = vmatpush1.msra.mxu0 %v1405
    %1448 = vmatprep.subr.mxu0 0.0
    %1449 = vmatpush1.msra.mxu0 %v1404
    %1450 = vmatprep.subr.mxu0 0.0
    %1451 = vmatpush1.msra.mxu0 %v1403
    %1452 = vmatprep.subr.mxu0 0.0
    %1453 = vmatpush2.msra.mxu0 0.0
    %1454 = vmatprep.subr.mxu0 0.0
    %1455 = vmatpush2.msra.mxu0 0.0
    %1456 = vmatprep.subr.mxu0 0.0
    %1457 = vmatpush2.msra.mxu0 0.0
    %1458 = vmatprep.subr.mxu0 0.0
    %1459 = vmatpush2.msra.mxu0 0.0
    %1460 = vmatprep.subr.mxu0 0.0
    %1461 = vmatpush2.msra.mxu0 0.0
    %1462 = vmatprep.subr.mxu0 0.0
    %1463 = vmatpush2.msra.mxu0 0.0
    %1464 = vmatprep.subr.mxu0 0.0
    %1465 = vmatpush2.msra.mxu0 0.0
    %1466 = vmatprep.subr.mxu0 0.0
    %1467 = vmatpush2.msra.mxu0 0.0
    %1468 = vmatprep.subr.mxu0 0.0
    %1469 = vmatpush2.msra.mxu0 0.0
    %1470 = vmatprep.subr.mxu0 0.0
    %1471 = vmatpush2.msra.mxu0 0.0
    %1472 = vmatprep.subr.mxu0 0.0
    %1473 = vmatpush2.msra.mxu0 0.0
    %1474 = vmatprep.subr.mxu0 0.0
    %1475 = vmatpush2.msra.mxu0 0.0
    %1476 = vmatprep.subr.mxu0 0.0
    %1477 = vmatpush2.msra.mxu0 0.0
    %1478 = vmatprep.subr.mxu0 0.0
    %1479 = vmatpush2.msra.mxu0 0.0
    %1480 = vmatprep.subr.mxu0 0.0
    %1481 = vmatpush2.msra.mxu0 0.0
    %1482 = vmatprep.subr.mxu0 0.0
    %1483 = vmatpush2.msra.mxu0 %v1419
    %1484 = vmatprep.mubr.f32.mxu0 %v982
    %1485 = vmatmul.mubr.f32.gmra.mxu0 %v944
    %v1486 = vpop.f32.mrf.mxu0
    %v1487 = vadd.f32 0.0, %v1486
    %v1488 = vpop.f32.mrf.mxu0
    %1489 = vdwg.mxu0
    %1490 = vrot.lane.b32.xlu0 %v1487, 127
    %v1491 = vpop.permute.xlu0 %1490
    %v1492 = vsub.f32 %v1491, %v1487
    %v1493 = vmax.f32 %v1492, 0.0
    %v1494 = vadd.f32 %v1385, %v1493
    %vm1495 = vcmp.eq.f32.partialorder %v911, 5.0
    %vm1496 = vcmp.eq.f32.partialorder %v912, 5.0
    %vm1497 = vcmp.eq.f32.partialorder %v913, 5.0
    %vm1498 = vcmp.eq.f32.partialorder %v914, 5.0
    %vm1499 = vcmp.eq.f32.partialorder %v915, 5.0
    %vm1500 = vcmp.eq.f32.partialorder %v916, 5.0
    %vm1501 = vcmp.eq.f32.partialorder %v917, 5.0
    %vm1502 = vcmp.eq.f32.partialorder %v918, 5.0
    %vm1503 = vcmp.eq.f32.partialorder %v919, 5.0
    %vm1504 = vcmp.eq.f32.partialorder %v920, 5.0
    %vm1505 = vcmp.eq.f32.partialorder %v921, 5.0
    %vm1506 = vcmp.eq.f32.partialorder %v922, 5.0
    %vm1507 = vcmp.eq.f32.partialorder %v923, 5.0
    %vm1508 = vcmp.eq.f32.partialorder %v924, 5.0
    %vm1509 = vcmp.eq.f32.partialorder %v925, 5.0
    %vm1510 = vcmp.eq.f32.partialorder %v926, 5.0
    %vm1511 = vcmp.eq.f32.partialorder %v927, 5.0
    %v1512 = vsel %vm1495, %v220, 0.0
    %v1513 = vsel %vm1496, %v227, 0.0
    %v1514 = vsel %vm1497, %v234, 0.0
    %v1515 = vsel %vm1498, %v241, 0.0
    %v1516 = vsel %vm1499, %v248, 0.0
    %v1517 = vsel %vm1500, %v255, 0.0
    %v1518 = vsel %vm1501, %v262, 0.0
    %v1519 = vsel %vm1502, %v269, 0.0
    %v1520 = vsel %vm1503, %v276, 0.0
    %v1521 = vsel %vm1504, %v283, 0.0
    %v1522 = vsel %vm1505, %v290, 0.0
    %v1523 = vsel %vm1506, %v297, 0.0
    %v1524 = vsel %vm1507, %v304, 0.0
    %v1525 = vsel %vm1508, %v311, 0.0
    %v1526 = vsel %vm1509, %v318, 0.0
    %v1527 = vsel %vm1510, %v325, 0.0
    %v1528 = vsel %vm1511, %v332, 0.0
    %1529 = vmatprep.subr.mxu0 0.0
    %1530 = vmatpush1.msra.mxu0 %v1527
    %1531 = vmatprep.subr.mxu0 0.0
    %1532 = vmatpush1.msra.mxu0 %v1526
    %1533 = vmatprep.subr.mxu0 0.0
    %1534 = vmatpush1.msra.mxu0 %v1525
    %1535 = vmatprep.subr.mxu0 0.0
    %1536 = vmatpush1.msra.mxu0 %v1524
    %1537 = vmatprep.subr.mxu0 0.0
    %1538 = vmatpush1.msra.mxu0 %v1523
    %1539 = vmatprep.subr.mxu0 0.0
    %1540 = vmatpush1.msra.mxu0 %v1522
    %1541 = vmatprep.subr.mxu0 0.0
    %1542 = vmatpush1.msra.mxu0 %v1521
    %1543 = vmatprep.subr.mxu0 0.0
    %1544 = vmatpush1.msra.mxu0 %v1520
    %1545 = vmatprep.subr.mxu0 0.0
    %1546 = vmatpush1.msra.mxu0 %v1519
    %1547 = vmatprep.subr.mxu0 0.0
    %1548 = vmatpush1.msra.mxu0 %v1518
    %1549 = vmatprep.subr.mxu0 0.0
    %1550 = vmatpush1.msra.mxu0 %v1517
    %1551 = vmatprep.subr.mxu0 0.0
    %1552 = vmatpush1.msra.mxu0 %v1516
    %1553 = vmatprep.subr.mxu0 0.0
    %1554 = vmatpush1.msra.mxu0 %v1515
    %1555 = vmatprep.subr.mxu0 0.0
    %1556 = vmatpush1.msra.mxu0 %v1514
    %1557 = vmatprep.subr.mxu0 0.0
    %1558 = vmatpush1.msra.mxu0 %v1513
    %1559 = vmatprep.subr.mxu0 0.0
    %1560 = vmatpush1.msra.mxu0 %v1512
    %1561 = vmatprep.subr.mxu0 0.0
    %1562 = vmatpush2.msra.mxu0 0.0
    %1563 = vmatprep.subr.mxu0 0.0
    %1564 = vmatpush2.msra.mxu0 0.0
    %1565 = vmatprep.subr.mxu0 0.0
    %1566 = vmatpush2.msra.mxu0 0.0
    %1567 = vmatprep.subr.mxu0 0.0
    %1568 = vmatpush2.msra.mxu0 0.0
    %1569 = vmatprep.subr.mxu0 0.0
    %1570 = vmatpush2.msra.mxu0 0.0
    %1571 = vmatprep.subr.mxu0 0.0
    %1572 = vmatpush2.msra.mxu0 0.0
    %1573 = vmatprep.subr.mxu0 0.0
    %1574 = vmatpush2.msra.mxu0 0.0
    %1575 = vmatprep.subr.mxu0 0.0
    %1576 = vmatpush2.msra.mxu0 0.0
    %1577 = vmatprep.subr.mxu0 0.0
    %1578 = vmatpush2.msra.mxu0 0.0
    %1579 = vmatprep.subr.mxu0 0.0
    %1580 = vmatpush2.msra.mxu0 0.0
    %1581 = vmatprep.subr.mxu0 0.0
    %1582 = vmatpush2.msra.mxu0 0.0
    %1583 = vmatprep.subr.mxu0 0.0
    %1584 = vmatpush2.msra.mxu0 0.0
    %1585 = vmatprep.subr.mxu0 0.0
    %1586 = vmatpush2.msra.mxu0 0.0
    %1587 = vmatprep.subr.mxu0 0.0
    %1588 = vmatpush2.msra.mxu0 0.0
    %1589 = vmatprep.subr.mxu0 0.0
    %1590 = vmatpush2.msra.mxu0 0.0
    %1591 = vmatprep.subr.mxu0 0.0
    %1592 = vmatpush2.msra.mxu0 %v1528
    %1593 = vmatprep.mubr.f32.mxu0 %v982
    %1594 = vmatmul.mubr.f32.gmra.mxu0 %v944
    %v1595 = vpop.f32.mrf.mxu0
    %v1596 = vadd.f32 0.0, %v1595
    %v1597 = vpop.f32.mrf.mxu0
    %1598 = vdwg.mxu0
    %1599 = vrot.lane.b32.xlu0 %v1596, 127
    %v1600 = vpop.permute.xlu0 %1599
    %v1601 = vsub.f32 %v1600, %v1596
    %v1602 = vmax.f32 %v1601, 0.0
    %v1603 = vadd.f32 %v1494, %v1602
    %vm1604 = vcmp.eq.f32.partialorder %v911, 6.0
    %vm1605 = vcmp.eq.f32.partialorder %v912, 6.0
    %vm1606 = vcmp.eq.f32.partialorder %v913, 6.0
    %vm1607 = vcmp.eq.f32.partialorder %v914, 6.0
    %vm1608 = vcmp.eq.f32.partialorder %v915, 6.0
    %vm1609 = vcmp.eq.f32.partialorder %v916, 6.0
    %vm1610 = vcmp.eq.f32.partialorder %v917, 6.0
    %vm1611 = vcmp.eq.f32.partialorder %v918, 6.0
    %vm1612 = vcmp.eq.f32.partialorder %v919, 6.0
    %vm1613 = vcmp.eq.f32.partialorder %v920, 6.0
    %vm1614 = vcmp.eq.f32.partialorder %v921, 6.0
    %vm1615 = vcmp.eq.f32.partialorder %v922, 6.0
    %vm1616 = vcmp.eq.f32.partialorder %v923, 6.0
    %vm1617 = vcmp.eq.f32.partialorder %v924, 6.0
    %vm1618 = vcmp.eq.f32.partialorder %v925, 6.0
    %vm1619 = vcmp.eq.f32.partialorder %v926, 6.0
    %vm1620 = vcmp.eq.f32.partialorder %v927, 6.0
    %v1621 = vsel %vm1604, %v220, 0.0
    %v1622 = vsel %vm1605, %v227, 0.0
    %v1623 = vsel %vm1606, %v234, 0.0
    %v1624 = vsel %vm1607, %v241, 0.0
    %v1625 = vsel %vm1608, %v248, 0.0
    %v1626 = vsel %vm1609, %v255, 0.0
    %v1627 = vsel %vm1610, %v262, 0.0
    %v1628 = vsel %vm1611, %v269, 0.0
    %v1629 = vsel %vm1612, %v276, 0.0
    %v1630 = vsel %vm1613, %v283, 0.0
    %v1631 = vsel %vm1614, %v290, 0.0
    %v1632 = vsel %vm1615, %v297, 0.0
    %v1633 = vsel %vm1616, %v304, 0.0
    %v1634 = vsel %vm1617, %v311, 0.0
    %v1635 = vsel %vm1618, %v318, 0.0
    %v1636 = vsel %vm1619, %v325, 0.0
    %v1637 = vsel %vm1620, %v332, 0.0
    %1638 = vmatprep.subr.mxu0 0.0
    %1639 = vmatpush1.msra.mxu0 %v1636
    %1640 = vmatprep.subr.mxu0 0.0
    %1641 = vmatpush1.msra.mxu0 %v1635
    %1642 = vmatprep.subr.mxu0 0.0
    %1643 = vmatpush1.msra.mxu0 %v1634
    %1644 = vmatprep.subr.mxu0 0.0
    %1645 = vmatpush1.msra.mxu0 %v1633
    %1646 = vmatprep.subr.mxu0 0.0
    %1647 = vmatpush1.msra.mxu0 %v1632
    %1648 = vmatprep.subr.mxu0 0.0
    %1649 = vmatpush1.msra.mxu0 %v1631
    %1650 = vmatprep.subr.mxu0 0.0
    %1651 = vmatpush1.msra.mxu0 %v1630
    %1652 = vmatprep.subr.mxu0 0.0
    %1653 = vmatpush1.msra.mxu0 %v1629
    %1654 = vmatprep.subr.mxu0 0.0
    %1655 = vmatpush1.msra.mxu0 %v1628
    %1656 = vmatprep.subr.mxu0 0.0
    %1657 = vmatpush1.msra.mxu0 %v1627
    %1658 = vmatprep.subr.mxu0 0.0
    %1659 = vmatpush1.msra.mxu0 %v1626
    %1660 = vmatprep.subr.mxu0 0.0
    %1661 = vmatpush1.msra.mxu0 %v1625
    %1662 = vmatprep.subr.mxu0 0.0
    %1663 = vmatpush1.msra.mxu0 %v1624
    %1664 = vmatprep.subr.mxu0 0.0
    %1665 = vmatpush1.msra.mxu0 %v1623
    %1666 = vmatprep.subr.mxu0 0.0
    %1667 = vmatpush1.msra.mxu0 %v1622
    %1668 = vmatprep.subr.mxu0 0.0
    %1669 = vmatpush1.msra.mxu0 %v1621
    %1670 = vmatprep.subr.mxu0 0.0
    %1671 = vmatpush2.msra.mxu0 0.0
    %1672 = vmatprep.subr.mxu0 0.0
    %1673 = vmatpush2.msra.mxu0 0.0
    %1674 = vmatprep.subr.mxu0 0.0
    %1675 = vmatpush2.msra.mxu0 0.0
    %1676 = vmatprep.subr.mxu0 0.0
    %1677 = vmatpush2.msra.mxu0 0.0
    %1678 = vmatprep.subr.mxu0 0.0
    %1679 = vmatpush2.msra.mxu0 0.0
    %1680 = vmatprep.subr.mxu0 0.0
    %1681 = vmatpush2.msra.mxu0 0.0
    %1682 = vmatprep.subr.mxu0 0.0
    %1683 = vmatpush2.msra.mxu0 0.0
    %1684 = vmatprep.subr.mxu0 0.0
    %1685 = vmatpush2.msra.mxu0 0.0
    %1686 = vmatprep.subr.mxu0 0.0
    %1687 = vmatpush2.msra.mxu0 0.0
    %1688 = vmatprep.subr.mxu0 0.0
    %1689 = vmatpush2.msra.mxu0 0.0
    %1690 = vmatprep.subr.mxu0 0.0
    %1691 = vmatpush2.msra.mxu0 0.0
    %1692 = vmatprep.subr.mxu0 0.0
    %1693 = vmatpush2.msra.mxu0 0.0
    %1694 = vmatprep.subr.mxu0 0.0
    %1695 = vmatpush2.msra.mxu0 0.0
    %1696 = vmatprep.subr.mxu0 0.0
    %1697 = vmatpush2.msra.mxu0 0.0
    %1698 = vmatprep.subr.mxu0 0.0
    %1699 = vmatpush2.msra.mxu0 0.0
    %1700 = vmatprep.subr.mxu0 0.0
    %1701 = vmatpush2.msra.mxu0 %v1637
    %1702 = vmatprep.mubr.f32.mxu0 %v982
    %1703 = vmatmul.mubr.f32.gmra.mxu0 %v944
    %v1704 = vpop.f32.mrf.mxu0
    %v1705 = vadd.f32 0.0, %v1704
    %v1706 = vpop.f32.mrf.mxu0
    %1707 = vdwg.mxu0
    %1708 = vrot.lane.b32.xlu0 %v1705, 127
    %v1709 = vpop.permute.xlu0 %1708
    %v1710 = vsub.f32 %v1709, %v1705
    %v1711 = vmax.f32 %v1710, 0.0
    %v1712 = vadd.f32 %v1603, %v1711
    %vm1713 = vcmp.eq.f32.partialorder %v911, 7.0
    %vm1714 = vcmp.eq.f32.partialorder %v912, 7.0
    %vm1715 = vcmp.eq.f32.partialorder %v913, 7.0
    %vm1716 = vcmp.eq.f32.partialorder %v914, 7.0
    %vm1717 = vcmp.eq.f32.partialorder %v915, 7.0
    %vm1718 = vcmp.eq.f32.partialorder %v916, 7.0
    %vm1719 = vcmp.eq.f32.partialorder %v917, 7.0
    %vm1720 = vcmp.eq.f32.partialorder %v918, 7.0
    %vm1721 = vcmp.eq.f32.partialorder %v919, 7.0
    %vm1722 = vcmp.eq.f32.partialorder %v920, 7.0
    %vm1723 = vcmp.eq.f32.partialorder %v921, 7.0
    %vm1724 = vcmp.eq.f32.partialorder %v922, 7.0
    %vm1725 = vcmp.eq.f32.partialorder %v923, 7.0
    %vm1726 = vcmp.eq.f32.partialorder %v924, 7.0
    %vm1727 = vcmp.eq.f32.partialorder %v925, 7.0
    %vm1728 = vcmp.eq.f32.partialorder %v926, 7.0
    %vm1729 = vcmp.eq.f32.partialorder %v927, 7.0
    %v1730 = vsel %vm1713, %v220, 0.0
    %v1731 = vsel %vm1714, %v227, 0.0
    %v1732 = vsel %vm1715, %v234, 0.0
    %v1733 = vsel %vm1716, %v241, 0.0
    %v1734 = vsel %vm1717, %v248, 0.0
    %v1735 = vsel %vm1718, %v255, 0.0
    %v1736 = vsel %vm1719, %v262, 0.0
    %v1737 = vsel %vm1720, %v269, 0.0
    %v1738 = vsel %vm1721, %v276, 0.0
    %v1739 = vsel %vm1722, %v283, 0.0
    %v1740 = vsel %vm1723, %v290, 0.0
    %v1741 = vsel %vm1724, %v297, 0.0
    %v1742 = vsel %vm1725, %v304, 0.0
    %v1743 = vsel %vm1726, %v311, 0.0
    %v1744 = vsel %vm1727, %v318, 0.0
    %v1745 = vsel %vm1728, %v325, 0.0
    %v1746 = vsel %vm1729, %v332, 0.0
    %1747 = vmatprep.subr.mxu0 0.0
    %1748 = vmatpush1.msra.mxu0 %v1745
    %1749 = vmatprep.subr.mxu0 0.0
    %1750 = vmatpush1.msra.mxu0 %v1744
    %1751 = vmatprep.subr.mxu0 0.0
    %1752 = vmatpush1.msra.mxu0 %v1743
    %1753 = vmatprep.subr.mxu0 0.0
    %1754 = vmatpush1.msra.mxu0 %v1742
    %1755 = vmatprep.subr.mxu0 0.0
    %1756 = vmatpush1.msra.mxu0 %v1741
    %1757 = vmatprep.subr.mxu0 0.0
    %1758 = vmatpush1.msra.mxu0 %v1740
    %1759 = vmatprep.subr.mxu0 0.0
    %1760 = vmatpush1.msra.mxu0 %v1739
    %1761 = vmatprep.subr.mxu0 0.0
    %1762 = vmatpush1.msra.mxu0 %v1738
    %1763 = vmatprep.subr.mxu0 0.0
    %1764 = vmatpush1.msra.mxu0 %v1737
    %1765 = vmatprep.subr.mxu0 0.0
    %1766 = vmatpush1.msra.mxu0 %v1736
    %1767 = vmatprep.subr.mxu0 0.0
    %1768 = vmatpush1.msra.mxu0 %v1735
    %1769 = vmatprep.subr.mxu0 0.0
    %1770 = vmatpush1.msra.mxu0 %v1734
    %1771 = vmatprep.subr.mxu0 0.0
    %1772 = vmatpush1.msra.mxu0 %v1733
    %1773 = vmatprep.subr.mxu0 0.0
    %1774 = vmatpush1.msra.mxu0 %v1732
    %1775 = vmatprep.subr.mxu0 0.0
    %1776 = vmatpush1.msra.mxu0 %v1731
    %1777 = vmatprep.subr.mxu0 0.0
    %1778 = vmatpush1.msra.mxu0 %v1730
    %1779 = vmatprep.subr.mxu0 0.0
    %1780 = vmatpush2.msra.mxu0 0.0
    %1781 = vmatprep.subr.mxu0 0.0
    %1782 = vmatpush2.msra.mxu0 0.0
    %1783 = vmatprep.subr.mxu0 0.0
    %1784 = vmatpush2.msra.mxu0 0.0
    %1785 = vmatprep.subr.mxu0 0.0
    %1786 = vmatpush2.msra.mxu0 0.0
    %1787 = vmatprep.subr.mxu0 0.0
    %1788 = vmatpush2.msra.mxu0 0.0
    %1789 = vmatprep.subr.mxu0 0.0
    %1790 = vmatpush2.msra.mxu0 0.0
    %1791 = vmatprep.subr.mxu0 0.0
    %1792 = vmatpush2.msra.mxu0 0.0
    %1793 = vmatprep.subr.mxu0 0.0
    %1794 = vmatpush2.msra.mxu0 0.0
    %1795 = vmatprep.subr.mxu0 0.0
    %1796 = vmatpush2.msra.mxu0 0.0
    %1797 = vmatprep.subr.mxu0 0.0
    %1798 = vmatpush2.msra.mxu0 0.0
    %1799 = vmatprep.subr.mxu0 0.0
    %1800 = vmatpush2.msra.mxu0 0.0
    %1801 = vmatprep.subr.mxu0 0.0
    %1802 = vmatpush2.msra.mxu0 0.0
    %1803 = vmatprep.subr.mxu0 0.0
    %1804 = vmatpush2.msra.mxu0 0.0
    %1805 = vmatprep.subr.mxu0 0.0
    %1806 = vmatpush2.msra.mxu0 0.0
    %1807 = vmatprep.subr.mxu0 0.0
    %1808 = vmatpush2.msra.mxu0 0.0
    %1809 = vmatprep.subr.mxu0 0.0
    %1810 = vmatpush2.msra.mxu0 %v1746
    %1811 = vmatprep.mubr.f32.mxu0 %v982
    %1812 = vmatmul.mubr.f32.gmra.mxu0 %v944
    %v1813 = vpop.f32.mrf.mxu0
    %v1814 = vadd.f32 0.0, %v1813
    %v1815 = vpop.f32.mrf.mxu0
    %1816 = vdwg.mxu0
    %1817 = vrot.lane.b32.xlu0 %v1814, 127
    %v1818 = vpop.permute.xlu0 %1817
    %v1819 = vsub.f32 %v1818, %v1814
    %v1820 = vmax.f32 %v1819, 0.0
    %v1821 = vadd.f32 %v1712, %v1820
    %vm1822 = vcmp.eq.f32.partialorder %v911, 8.0
    %vm1823 = vcmp.eq.f32.partialorder %v912, 8.0
    %vm1824 = vcmp.eq.f32.partialorder %v913, 8.0
    %vm1825 = vcmp.eq.f32.partialorder %v914, 8.0
    %vm1826 = vcmp.eq.f32.partialorder %v915, 8.0
    %vm1827 = vcmp.eq.f32.partialorder %v916, 8.0
    %vm1828 = vcmp.eq.f32.partialorder %v917, 8.0
    %vm1829 = vcmp.eq.f32.partialorder %v918, 8.0
    %vm1830 = vcmp.eq.f32.partialorder %v919, 8.0
    %vm1831 = vcmp.eq.f32.partialorder %v920, 8.0
    %vm1832 = vcmp.eq.f32.partialorder %v921, 8.0
    %vm1833 = vcmp.eq.f32.partialorder %v922, 8.0
    %vm1834 = vcmp.eq.f32.partialorder %v923, 8.0
    %vm1835 = vcmp.eq.f32.partialorder %v924, 8.0
    %vm1836 = vcmp.eq.f32.partialorder %v925, 8.0
    %vm1837 = vcmp.eq.f32.partialorder %v926, 8.0
    %vm1838 = vcmp.eq.f32.partialorder %v927, 8.0
    %v1839 = vsel %vm1822, %v220, 0.0
    %v1840 = vsel %vm1823, %v227, 0.0
    %v1841 = vsel %vm1824, %v234, 0.0
    %v1842 = vsel %vm1825, %v241, 0.0
    %v1843 = vsel %vm1826, %v248, 0.0
    %v1844 = vsel %vm1827, %v255, 0.0
    %v1845 = vsel %vm1828, %v262, 0.0
    %v1846 = vsel %vm1829, %v269, 0.0
    %v1847 = vsel %vm1830, %v276, 0.0
    %v1848 = vsel %vm1831, %v283, 0.0
    %v1849 = vsel %vm1832, %v290, 0.0
    %v1850 = vsel %vm1833, %v297, 0.0
    %v1851 = vsel %vm1834, %v304, 0.0
    %v1852 = vsel %vm1835, %v311, 0.0
    %v1853 = vsel %vm1836, %v318, 0.0
    %v1854 = vsel %vm1837, %v325, 0.0
    %v1855 = vsel %vm1838, %v332, 0.0
    %1856 = vmatprep.subr.mxu0 0.0
    %1857 = vmatpush1.msra.mxu0 %v1854
    %1858 = vmatprep.subr.mxu0 0.0
    %1859 = vmatpush1.msra.mxu0 %v1853
    %1860 = vmatprep.subr.mxu0 0.0
    %1861 = vmatpush1.msra.mxu0 %v1852
    %1862 = vmatprep.subr.mxu0 0.0
    %1863 = vmatpush1.msra.mxu0 %v1851
    %1864 = vmatprep.subr.mxu0 0.0
    %1865 = vmatpush1.msra.mxu0 %v1850
    %1866 = vmatprep.subr.mxu0 0.0
    %1867 = vmatpush1.msra.mxu0 %v1849
    %1868 = vmatprep.subr.mxu0 0.0
    %1869 = vmatpush1.msra.mxu0 %v1848
    %1870 = vmatprep.subr.mxu0 0.0
    %1871 = vmatpush1.msra.mxu0 %v1847
    %1872 = vmatprep.subr.mxu0 0.0
    %1873 = vmatpush1.msra.mxu0 %v1846
    %1874 = vmatprep.subr.mxu0 0.0
    %1875 = vmatpush1.msra.mxu0 %v1845
    %1876 = vmatprep.subr.mxu0 0.0
    %1877 = vmatpush1.msra.mxu0 %v1844
    %1878 = vmatprep.subr.mxu0 0.0
    %1879 = vmatpush1.msra.mxu0 %v1843
    %1880 = vmatprep.subr.mxu0 0.0
    %1881 = vmatpush1.msra.mxu0 %v1842
    %1882 = vmatprep.subr.mxu0 0.0
    %1883 = vmatpush1.msra.mxu0 %v1841
    %1884 = vmatprep.subr.mxu0 0.0
    %1885 = vmatpush1.msra.mxu0 %v1840
    %1886 = vmatprep.subr.mxu0 0.0
    %1887 = vmatpush1.msra.mxu0 %v1839
    %1888 = vmatprep.subr.mxu0 0.0
    %1889 = vmatpush2.msra.mxu0 0.0
    %1890 = vmatprep.subr.mxu0 0.0
    %1891 = vmatpush2.msra.mxu0 0.0
    %1892 = vmatprep.subr.mxu0 0.0
    %1893 = vmatpush2.msra.mxu0 0.0
    %1894 = vmatprep.subr.mxu0 0.0
    %1895 = vmatpush2.msra.mxu0 0.0
    %1896 = vmatprep.subr.mxu0 0.0
    %1897 = vmatpush2.msra.mxu0 0.0
    %1898 = vmatprep.subr.mxu0 0.0
    %1899 = vmatpush2.msra.mxu0 0.0
    %1900 = vmatprep.subr.mxu0 0.0
    %1901 = vmatpush2.msra.mxu0 0.0
    %1902 = vmatprep.subr.mxu0 0.0
    %1903 = vmatpush2.msra.mxu0 0.0
    %1904 = vmatprep.subr.mxu0 0.0
    %1905 = vmatpush2.msra.mxu0 0.0
    %1906 = vmatprep.subr.mxu0 0.0
    %1907 = vmatpush2.msra.mxu0 0.0
    %1908 = vmatprep.subr.mxu0 0.0
    %1909 = vmatpush2.msra.mxu0 0.0
    %1910 = vmatprep.subr.mxu0 0.0
    %1911 = vmatpush2.msra.mxu0 0.0
    %1912 = vmatprep.subr.mxu0 0.0
    %1913 = vmatpush2.msra.mxu0 0.0
    %1914 = vmatprep.subr.mxu0 0.0
    %1915 = vmatpush2.msra.mxu0 0.0
    %1916 = vmatprep.subr.mxu0 0.0
    %1917 = vmatpush2.msra.mxu0 0.0
    %1918 = vmatprep.subr.mxu0 0.0
    %1919 = vmatpush2.msra.mxu0 %v1855
    %1920 = vmatprep.mubr.f32.mxu0 %v982
    %1921 = vmatmul.mubr.f32.gmra.mxu0 %v944
    %v1922 = vpop.f32.mrf.mxu0
    %v1923 = vadd.f32 0.0, %v1922
    %v1924 = vpop.f32.mrf.mxu0
    %1925 = vdwg.mxu0
    %1926 = vrot.lane.b32.xlu0 %v1923, 127
    %v1927 = vpop.permute.xlu0 %1926
    %v1928 = vsub.f32 %v1927, %v1923
    %v1929 = vmax.f32 %v1928, 0.0
    %v1930 = vadd.f32 %v1821, %v1929
    %vm1931 = vcmp.eq.f32.partialorder %v911, 9.0
    %vm1932 = vcmp.eq.f32.partialorder %v912, 9.0
    %vm1933 = vcmp.eq.f32.partialorder %v913, 9.0
    %vm1934 = vcmp.eq.f32.partialorder %v914, 9.0
    %vm1935 = vcmp.eq.f32.partialorder %v915, 9.0
    %vm1936 = vcmp.eq.f32.partialorder %v916, 9.0
    %vm1937 = vcmp.eq.f32.partialorder %v917, 9.0
    %vm1938 = vcmp.eq.f32.partialorder %v918, 9.0
    %vm1939 = vcmp.eq.f32.partialorder %v919, 9.0
    %vm1940 = vcmp.eq.f32.partialorder %v920, 9.0
    %vm1941 = vcmp.eq.f32.partialorder %v921, 9.0
    %vm1942 = vcmp.eq.f32.partialorder %v922, 9.0
    %vm1943 = vcmp.eq.f32.partialorder %v923, 9.0
    %vm1944 = vcmp.eq.f32.partialorder %v924, 9.0
    %vm1945 = vcmp.eq.f32.partialorder %v925, 9.0
    %vm1946 = vcmp.eq.f32.partialorder %v926, 9.0
    %vm1947 = vcmp.eq.f32.partialorder %v927, 9.0
    %v1948 = vsel %vm1931, %v220, 0.0
    %v1949 = vsel %vm1932, %v227, 0.0
    %v1950 = vsel %vm1933, %v234, 0.0
    %v1951 = vsel %vm1934, %v241, 0.0
    %v1952 = vsel %vm1935, %v248, 0.0
    %v1953 = vsel %vm1936, %v255, 0.0
    %v1954 = vsel %vm1937, %v262, 0.0
    %v1955 = vsel %vm1938, %v269, 0.0
    %v1956 = vsel %vm1939, %v276, 0.0
    %v1957 = vsel %vm1940, %v283, 0.0
    %v1958 = vsel %vm1941, %v290, 0.0
    %v1959 = vsel %vm1942, %v297, 0.0
    %v1960 = vsel %vm1943, %v304, 0.0
    %v1961 = vsel %vm1944, %v311, 0.0
    %v1962 = vsel %vm1945, %v318, 0.0
    %v1963 = vsel %vm1946, %v325, 0.0
    %v1964 = vsel %vm1947, %v332, 0.0
    %1965 = vmatprep.subr.mxu0 0.0
    %1966 = vmatpush1.msra.mxu0 %v1963
    %1967 = vmatprep.subr.mxu0 0.0
    %1968 = vmatpush1.msra.mxu0 %v1962
    %1969 = vmatprep.subr.mxu0 0.0
    %1970 = vmatpush1.msra.mxu0 %v1961
    %1971 = vmatprep.subr.mxu0 0.0
    %1972 = vmatpush1.msra.mxu0 %v1960
    %1973 = vmatprep.subr.mxu0 0.0
    %1974 = vmatpush1.msra.mxu0 %v1959
    %1975 = vmatprep.subr.mxu0 0.0
    %1976 = vmatpush1.msra.mxu0 %v1958
    %1977 = vmatprep.subr.mxu0 0.0
    %1978 = vmatpush1.msra.mxu0 %v1957
    %1979 = vmatprep.subr.mxu0 0.0
    %1980 = vmatpush1.msra.mxu0 %v1956
    %1981 = vmatprep.subr.mxu0 0.0
    %1982 = vmatpush1.msra.mxu0 %v1955
    %1983 = vmatprep.subr.mxu0 0.0
    %1984 = vmatpush1.msra.mxu0 %v1954
    %1985 = vmatprep.subr.mxu0 0.0
    %1986 = vmatpush1.msra.mxu0 %v1953
    %1987 = vmatprep.subr.mxu0 0.0
    %1988 = vmatpush1.msra.mxu0 %v1952
    %1989 = vmatprep.subr.mxu0 0.0
    %1990 = vmatpush1.msra.mxu0 %v1951
    %1991 = vmatprep.subr.mxu0 0.0
    %1992 = vmatpush1.msra.mxu0 %v1950
    %1993 = vmatprep.subr.mxu0 0.0
    %1994 = vmatpush1.msra.mxu0 %v1949
    %1995 = vmatprep.subr.mxu0 0.0
    %1996 = vmatpush1.msra.mxu0 %v1948
    %1997 = vmatprep.subr.mxu0 0.0
    %1998 = vmatpush2.msra.mxu0 0.0
    %1999 = vmatprep.subr.mxu0 0.0
    %2000 = vmatpush2.msra.mxu0 0.0
    %2001 = vmatprep.subr.mxu0 0.0
    %2002 = vmatpush2.msra.mxu0 0.0
    %2003 = vmatprep.subr.mxu0 0.0
    %2004 = vmatpush2.msra.mxu0 0.0
    %2005 = vmatprep.subr.mxu0 0.0
    %2006 = vmatpush2.msra.mxu0 0.0
    %2007 = vmatprep.subr.mxu0 0.0
    %2008 = vmatpush2.msra.mxu0 0.0
    %2009 = vmatprep.subr.mxu0 0.0
    %2010 = vmatpush2.msra.mxu0 0.0
    %2011 = vmatprep.subr.mxu0 0.0
    %2012 = vmatpush2.msra.mxu0 0.0
    %2013 = vmatprep.subr.mxu0 0.0
    %2014 = vmatpush2.msra.mxu0 0.0
    %2015 = vmatprep.subr.mxu0 0.0
    %2016 = vmatpush2.msra.mxu0 0.0
    %2017 = vmatprep.subr.mxu0 0.0
    %2018 = vmatpush2.msra.mxu0 0.0
    %2019 = vmatprep.subr.mxu0 0.0
    %2020 = vmatpush2.msra.mxu0 0.0
    %2021 = vmatprep.subr.mxu0 0.0
    %2022 = vmatpush2.msra.mxu0 0.0
    %2023 = vmatprep.subr.mxu0 0.0
    %2024 = vmatpush2.msra.mxu0 0.0
    %2025 = vmatprep.subr.mxu0 0.0
    %2026 = vmatpush2.msra.mxu0 0.0
    %2027 = vmatprep.subr.mxu0 0.0
    %2028 = vmatpush2.msra.mxu0 %v1964
    %2029 = vmatprep.mubr.f32.mxu0 %v982
    %2030 = vmatmul.mubr.f32.gmra.mxu0 %v944
    %v2031 = vpop.f32.mrf.mxu0
    %v2032 = vadd.f32 0.0, %v2031
    %v2033 = vpop.f32.mrf.mxu0
    %2034 = vdwg.mxu0
    %2035 = vrot.lane.b32.xlu0 %v2032, 127
    %v2036 = vpop.permute.xlu0 %2035
    %v2037 = vsub.f32 %v2036, %v2032
    %v2038 = vmax.f32 %v2037, 0.0
    %v2039 = vadd.f32 %v1930, %v2038
    %vm2040 = vcmp.lt.s32.totalorder %v931, 14
    %v2041 = vsel %vm2040, 1, 0
    %vm2042 = vcmp.eq.s32.totalorder %v2041, 1
    %v2043 = vsel %vm2042, %v2039, -inf
    %2044 = vmax.xlane.f32.xlu0 %v2043
    %v2045 = vpop.xlane.xlu0 %2044
    %vm2046 = vcmp.gt.f32.partialorder %v2045, 0.0
    %v2047 = vsel %vm2046, %v2045, 1.0
    %v2048 = vrcp.pop %v2047
    %v2049 = vmul.f32 1.0, %v2048
    %v2050 = vmul.f32 %v2039, %v2049
    %v2051 = vsel %vm2042, %v2050, 0.0
    %2052 = vst [vmem:[#allocation6] sm:$0xff] %v2051
    %2053 = vadd.xlane.f32.xlu0 %v2051
    %v2054 = vpop.xlane.xlu0 %2053
    %v2055 = vmul.f32 %v2054, 0.071428575
    %2056 = vrot.lane.b32.xlu0 %v2051, 127
    %v2057 = vpop.permute.xlu0 %2056
    %2058 = vrot.lane.b32.xlu0 %v2057, 127
    %v2059 = vpop.permute.xlu0 %2058
    %2060 = vrot.lane.b32.xlu0 %v2059, 127
    %v2061 = vpop.permute.xlu0 %2060
    %2062 = vrot.lane.b32.xlu0 %v2061, 127
    %v2063 = vpop.permute.xlu0 %2062
    %2064 = vrot.lane.b32.xlu0 %v2063, 127
    %v2065 = vpop.permute.xlu0 %2064
    %v2066 = vadd.f32 %v2051, %v2057
    %v2067 = vadd.f32 %v2066, %v2059
    %v2068 = vadd.f32 %v2067, %v2061
    %v2069 = vmul.f32 %v2068, 0.25
    %vm2070 = vcmp.lt.s32.totalorder %v931, 11
    %v2071 = vsel %vm2070, 1, 0
    %vm2072 = vcmp.eq.s32.totalorder %v2071, 1
    %v2073 = vsel %vm2072, %v2069, 0.0
    %v2074 = vmax.f32 %v2051, %v2057
    %v2075 = vmax.f32 %v2059, %v2061
    %v2076 = vmax.f32 %v2074, %v2075
    %v2077 = vmax.f32 %v2063, %v2065
    %v2078 = vmax.f32 %v2076, %v2077
    %vm2079 = vcmp.lt.s32.totalorder %v931, 9
    %v2080 = vsel %vm2079, 1, 0
    %vm2081 = vcmp.eq.s32.totalorder %v2080, 1
    %v2082 = vsel %vm2081, %v2078, 0.0
    %v2083 = vsub.f32 %v2082, %v2073
    %v2084 = vmul.f32 %v2055, 0.1
    %vm2085 = vcmp.gt.f32.partialorder %v2083, %v2084
    %vm2086 = vcmp.eq.f32.partialorder %v2082, %v2051
    %vm2087 = vmand %vm2085, %vm2086
    %v2088 = vsel %vm2087, 1, 0
    %v2089 = vcvt.s32.f32 %v2088
    %2090 = vrot.lane.b32.xlu0 %v2089, 127
    %v2091 = vpop.permute.xlu0 %2090
    %vm2092 = vcmp.ne.f32.partialorder %v2091, %v2089
    %vm2093 = vcmp.lt.s32.totalorder %v931, 13
    %v2094 = vsel %vm2093, 1, 0
    %vm2095 = vcmp.eq.s32.totalorder %v2094, 1
    %vm2096 = vmand %vm2092, %vm2095
    %v2097 = vsel %vm2096, %v2089, 0.0
    %v2098 = vcvt.f32.s32.to.zero.pseudo %v2097
    %2099 = vst [vmem:[#allocation5] sm:$0xff] %v2098
    // Predicated region
    $region10: #{tpu_custom_call.1} parent=1 // pred_check
      _
    $region11: #{tpu_custom_call.1} parent=1 // pred_check_branch
      %2101 = sbr.rel (0) target = $region13
    $region12: #{tpu_custom_call.1} parent=1 // pred_region
      %s2103 = ssub.s32 128, 128
      %2104 = vsyncadd [#allocation4], %s2103
      %s2106 = sshll.u32 [#allocation5], 4
      %s2107 = int_to_ptr.vmem [resolvable:$true] %s2106
      %2109 = dma.vmem_to_hbm [thread:$0]  %s2107, 128, %s1, [#allocation4]
    $region13: #{tpu_custom_call.1} parent=1 // pred_fallthru
      _
    // Predicated region
    $region14: #{tpu_custom_call.1} parent=1 // pred_check
      _
    $region15: #{tpu_custom_call.1} parent=1 // pred_check_branch
      %2111 = sbr.rel (0) target = $region17
    $region16: #{tpu_custom_call.1} parent=1 // pred_region
      %s2113 = ssub.s32 128, 128
      %2114 = vsyncadd [#allocation7], %s2113
      %s2116 = sshll.u32 [#allocation6], 4
      %s2117 = int_to_ptr.vmem [resolvable:$true] %s2116
      %2119 = dma.vmem_to_hbm [thread:$0]  %s2117, 128, %s2, [#allocation7]
    $region17: #{tpu_custom_call.1} parent=1 // pred_fallthru
      _
    // Predicated region
    $region18: #{tpu_custom_call.1} parent=1 // pred_check
      _
    $region19: #{tpu_custom_call.1} parent=1 // pred_check_branch
      %2121 = sbr.rel (0) target = $region21
    $region20: #{tpu_custom_call.1} parent=1 // pred_region
      %2122 = dma.done [#allocation4], 128
    $region21: #{tpu_custom_call.1} parent=1 // pred_fallthru
      _
    // Predicated region
    $region22: #{tpu_custom_call.1} parent=1 // pred_check
      _
    $region23: #{tpu_custom_call.1} parent=1 // pred_check_branch
      %2124 = sbr.rel (0) target = $region25
    $region24: #{tpu_custom_call.1} parent=1 // pred_region
      %2125 = dma.done [#allocation7], 128
    $region25: #{tpu_custom_call.1} parent=1 // pred_fallthru
      _
    %2126 = vsyncpa [#allocation3], 1
    %2127 = vsyncpa [#allocation4], 1
    %2128 = vsyncpa [#allocation7], 1

</llo_original>
